<compile_context>
chip_gen: v5e
topology: v5e:2x2
jax: 0.10.0
libtpu: 0.0.40
codegen_flags: <defaults>
</compile_context>

<pallas_src>
import functools

import jax
import jax.numpy as jnp
import numpy as np
from jax import lax
from jax.experimental import pallas as pl
from jax.experimental.pallas import tpu as pltpu


# ----------------------------- Pallas kernel --------------------------------


def _fused_lstm_kernel(num_layers, x_ref, *refs):
    """Whole forward pass in one invocation (grid=()).

    refs layout:
      [wih_t, whh_t, bias] * num_layers, h0, c0, lin_w_t, lin_b,   (inputs)
      out,                                                          (output)
      seq_scr (T,Bp,H), proj_scr (CT,Bp,4H)                         (scratch)
    """
    n_w = 3 * num_layers
    layer_refs = refs[:n_w]
    h0_ref, c0_ref, lw_ref, lb_ref, out_ref, seq_scr, proj_scr = refs[n_w:]

    T, Bp, _ = x_ref.shape
    H = h0_ref.shape[-1]
    CT = proj_scr.shape[0]                     # projection chunk length

    h_last = None
    for l in range(num_layers):                # static unroll over layers
        wih = layer_refs[3 * l][...]           # (D_in, 4H), gate order i,f,o,g
        whh = layer_refs[3 * l + 1][...]       # (H, 4H), resident across steps
        bias = layer_refs[3 * l + 2][...]      # (1, 4H) = b_ih + b_hh
        # Hoist the bias broadcast out of the chunk loop (not CSE'd by JAX).
        bias_full = jnp.broadcast_to(bias, (CT * Bp, 4 * H))

        write_seq = l < num_layers - 1         # last layer only needs h_T
        h = h0_ref[l]
        c = c0_ref[l]

        for start in range(0, T, CT):          # static chunk loop
            cl = min(CT, T - start)

            # Chunked hoisted input projection: one MXU matmul per chunk,
            # stored into the small per-chunk scratch.
            if l == 0:
                x_chunk = x_ref[pl.ds(start, cl), :, :]
            else:
                x_chunk = seq_scr[pl.ds(start, cl), :, :]
            d_in = x_chunk.shape[-1]
            xc = x_chunk.reshape(cl * Bp, d_in).astype(wih.dtype)
            proj = (jnp.dot(xc, wih, preferred_element_type=jnp.float32)
                    + bias_full[: cl * Bp])
            proj_scr[pl.ds(0, cl), :, :] = proj.reshape(cl, Bp, 4 * H)

            def step(t, carry, whh=whh, write_seq=write_seq, start=start):
                h, c = carry
                gates = (jnp.dot(h.astype(whh.dtype), whh,
                                 preferred_element_type=jnp.float32)
                         + proj_scr[t])        # (Bp, 4H)
                # Gate order (i, f, o, g): one sigmoid slab + one tanh.
                sig = jax.nn.sigmoid(gates[:, : 3 * H])
                i_g = sig[:, 0 * H:1 * H]
                f_g = sig[:, 1 * H:2 * H]
                o_g = sig[:, 2 * H:3 * H]
                g_g = jnp.tanh(gates[:, 3 * H:])
                c_new = f_g * c + i_g * g_g
                h_new = o_g * jnp.tanh(c_new)
                if write_seq:
                    seq_scr[start + t] = h_new  # inter-layer activations (VMEM)
                return (h_new, c_new)

            # Bounded unroll: steps are serially dependent, full unroll only
            # bloats code size / live ranges at large T.
            h, c = lax.fori_loop(0, cl, step, (h, c), unroll=min(8, cl))

        h_last = h

    # Final Linear on the last timestep's hidden state of the top layer.
    lw = lw_ref[...]
    out_ref[...] = (jnp.dot(h_last.astype(lw.dtype), lw,
                            preferred_element_type=jnp.float32)
                    + lb_ref[...]).astype(out_ref.dtype)


# ------------------------------ host wrappers -------------------------------


def prepare_params(params, num_layers, mxu_dtype=jnp.float32):
    """Pre-transpose / pre-pack weights once, OUTSIDE the jitted forward.

    Gate blocks are reordered (i,f,g,o) -> (i,f,o,g) so the kernel can apply
    sigmoid to one contiguous slab.  Pass mxu_dtype=jnp.bfloat16 at production
    sizes (MXU operands only; accumulation and gate math stay f32).
    """
    def reorder(w):                                       # axis 0 = 4H
        H = w.shape[0] // 4
        return jnp.concatenate([w[:2 * H], w[3 * H:4 * H], w[2 * H:3 * H]],
                               axis=0)

    flat = []
    for l in range(num_layers):
        p = params[f"layer{l}"]
        flat.append(jnp.transpose(reorder(p["w_ih"])).astype(mxu_dtype))   # (D_in, 4H)
        flat.append(jnp.transpose(reorder(p["w_hh"])).astype(mxu_dtype))   # (H, 4H)
        flat.append(reorder(p["b_ih"] + p["b_hh"])[None, :])               # (1, 4H) f32
    flat.append(jnp.transpose(params["lin_w"]).astype(mxu_dtype))          # (H, O)
    flat.append(params["lin_b"][None, :])                                  # (1, O)
    return tuple(flat)


def _nbytes(shape, dtype):
    return int(np.prod(shape)) * jnp.dtype(dtype).itemsize


@functools.partial(jax.jit, static_argnames=("num_layers", "proj_chunk"))
def lstm_module_forward(inputseq, prepped, h0, c0, *, num_layers, proj_chunk=64):
    """Equivalent of LSTM.forward. inputseq: (B, T, input_size) -> (B, O)."""
    B, T, _ = inputseq.shape
    H = h0.shape[-1]
    O = prepped[-1].shape[-1]
    Bp = max(8, ((B + 7) // 8) * 8)           # pad batch to a full sublane tile
    CT = max(1, min(proj_chunk, T))           # projection chunk length

    x = jnp.transpose(inputseq, (1, 0, 2))    # time-major (T, B, D) for kernel
    x = jnp.pad(x, ((0, 0), (0, Bp - B), (0, 0)))
    h0p = jnp.pad(h0, ((0, 0), (0, Bp - B), (0, 0)))
    c0p = jnp.pad(c0, ((0, 0), (0, Bp - B), (0, 0)))

    layer_w = prepped[:3 * num_layers]
    lw_t, lb = prepped[-2], prepped[-1]

    # Everything is a full-array VMEM block loaded once (no pipelined grid, so
    # weights / carries are not pointlessly double-buffered).
    in_specs = [pl.BlockSpec(x.shape, lambda: (0, 0, 0))]
    for w in layer_w:
        in_specs.append(pl.BlockSpec(w.shape, lambda: (0, 0)))
    in_specs += [
        pl.BlockSpec(h0p.shape, lambda: (0, 0, 0)),
        pl.BlockSpec(c0p.shape, lambda: (0, 0, 0)),
        pl.BlockSpec(lw_t.shape, lambda: (0, 0)),
        pl.BlockSpec(lb.shape, lambda: (0, 0)),
    ]

    seq_scr_shape = (T, Bp, H)                # inter-layer activations
    proj_scr_shape = (CT, Bp, 4 * H)          # per-chunk gate projections

    # Scoped-VMEM limit sized from the actual operand + scratch footprint
    # (default 16/32 MiB limits are too small at production T/H).
    est = (_nbytes(x.shape, x.dtype)
           + sum(_nbytes(w.shape, w.dtype) for w in layer_w)
           + _nbytes(h0p.shape, h0p.dtype) + _nbytes(c0p.shape, c0p.dtype)
           + _nbytes(lw_t.shape, lw_t.dtype) + _nbytes(lb.shape, lb.dtype)
           + _nbytes((Bp, O), jnp.float32)
           + _nbytes(seq_scr_shape, jnp.float32)
           + _nbytes(proj_scr_shape, jnp.float32))
    vmem_limit = int(min(100 * 2**20, max(16 * 2**20, 2 * est + (1 << 20))))

    out = pl.pallas_call(
        functools.partial(_fused_lstm_kernel, num_layers),
        out_shape=jax.ShapeDtypeStruct((Bp, O), jnp.float32),
        grid=(),
        in_specs=in_specs,
        out_specs=pl.BlockSpec((Bp, O), lambda: (0, 0)),
        scratch_shapes=[
            pltpu.VMEM(seq_scr_shape, jnp.float32),
            pltpu.VMEM(proj_scr_shape, jnp.float32),
        ],
        compiler_params=pltpu.CompilerParams(vmem_limit_bytes=vmem_limit),
    )(x, *layer_w, h0p, c0p, lw_t, lb)
    return out[:B]


# ------------------------------ reference (pure JAX) ------------------------


def lstm_module_forward_ref(inputseq, params, h0, c0, num_layers):
    x = inputseq  # (B, T, D)
    for l in range(num_layers):
        p = params[f"layer{l}"]
        H = h0.shape[-1]

        def step(carry, x_t, p=p, H=H):
            h, c = carry
            gates = x_t @ p["w_ih"].T + p["b_ih"] + h @ p["w_hh"].T + p["b_hh"]
            i = jax.nn.sigmoid(gates[:, 0 * H:1 * H])
            f = jax.nn.sigmoid(gates[:, 1 * H:2 * H])
            g = jnp.tanh(gates[:, 2 * H:3 * H])
            o = jax.nn.sigmoid(gates[:, 3 * H:4 * H])
            c = f * c + i * g
            h = o * jnp.tanh(c)
            return (h, c), h

        (_, _), hs = lax.scan(step, (h0[l], c0[l]), jnp.transpose(x, (1, 0, 2)))
        x = jnp.transpose(hs, (1, 0, 2))
    return x[:, -1, :] @ params["lin_w"].T + params["lin_b"]


# ----------------------------------- main -----------------------------------


if __name__ == "__main__":
    # module hyper-parameters (small, consistent with the torch module)
    input_size, hidden_size, num_layers, output_size = 4, 32, 2, 4
    batch_size, seq_len = 2, 8

    key = jax.random.PRNGKey(0)
    keys = iter(jax.random.split(key, 32))
    bound = 1.0 / np.sqrt(hidden_size)

    params = {}
    for l in range(num_layers):
        d_in = input_size if l == 0 else hidden_size
        params[f"layer{l}"] = {
            "w_ih": jax.random.uniform(next(keys), (4 * hidden_size, d_in),
                                       jnp.float32, -bound, bound),
            "w_hh": jax.random.uniform(next(keys), (4 * hidden_size, hidden_size),
                                       jnp.float32, -bound, bound),
            "b_ih": jax.random.uniform(next(keys), (4 * hidden_size,),
                                       jnp.float32, -bound, bound),
            "b_hh": jax.random.uniform(next(keys), (4 * hidden_size,),
                                       jnp.float32, -bound, bound),
        }
    params["lin_w"] = jax.random.uniform(next(keys), (output_size, hidden_size),
                                         jnp.float32, -bound, bound)
    params["lin_b"] = jax.random.uniform(next(keys), (output_size,),
                                         jnp.float32, -bound, bound)

    # forward(): h_0, c_0 are randn in torch; deterministic normal draws here.
    h0 = jax.random.normal(next(keys), (num_layers, batch_size, hidden_size), jnp.float32)
    c0 = jax.random.normal(next(keys), (num_layers, batch_size, hidden_size), jnp.float32)

    inputseq = jax.random.normal(next(keys), (batch_size, seq_len, input_size), jnp.float32)

    # One-time weight packing (gate reorder, transposes, bias combine).
    # Use mxu_dtype=jnp.bfloat16 at production sizes (loosen the check below).
    prepped = prepare_params(params, num_layers, mxu_dtype=jnp.float32)

    # proj_chunk=4 exercises the multi-chunk projection path at T=8.
    pred = lstm_module_forward(inputseq, prepped, h0, c0,
                               num_layers=num_layers, proj_chunk=4)
    pred = jax.block_until_ready(pred)

    ref = lstm_module_forward_ref(inputseq, params, h0, c0, num_layers)
    np.testing.assert_allclose(np.asarray(pred), np.asarray(ref), rtol=2e-5, atol=2e-5)

    print("KERNEL_OK")
</pallas_src>

<mosaic_0001>
module attributes {stable_mosaic.version = 11 : i64} {
  func.func @_fused_lstm_kernel(%arg0: memref<8x8x4xf32, #tpu.memory_space<vmem>>, %arg1: memref<4x128xf32, #tpu.memory_space<vmem>>, %arg2: memref<32x128xf32, #tpu.memory_space<vmem>>, %arg3: memref<1x128xf32, #tpu.memory_space<vmem>>, %arg4: memref<32x128xf32, #tpu.memory_space<vmem>>, %arg5: memref<32x128xf32, #tpu.memory_space<vmem>>, %arg6: memref<1x128xf32, #tpu.memory_space<vmem>>, %arg7: memref<2x8x32xf32, #tpu.memory_space<vmem>>, %arg8: memref<2x8x32xf32, #tpu.memory_space<vmem>>, %arg9: memref<32x4xf32, #tpu.memory_space<vmem>>, %arg10: memref<1x4xf32, #tpu.memory_space<vmem>>, %arg11: memref<8x4xf32, #tpu.memory_space<vmem>>, %arg12: memref<8x8x32xf32, #tpu.memory_space<vmem>>, %arg13: memref<4x8x128xf32, #tpu.memory_space<vmem>>) attributes {dimension_semantics = [], scalar_prefetch = 0 : i64, scratch_operands = 2 : i64, tpu.core_type = #tpu.core_type<tc>} {
    %c0 = arith.constant 0 : index
    %c0_0 = arith.constant 0 : index
    %0 = vector.load %arg1[%c0, %c0_0] : memref<4x128xf32, #tpu.memory_space<vmem>>, vector<4x128xf32>
    %c0_1 = arith.constant 0 : index
    %c0_2 = arith.constant 0 : index
    %1 = vector.load %arg2[%c0_1, %c0_2] : memref<32x128xf32, #tpu.memory_space<vmem>>, vector<32x128xf32>
    %c0_3 = arith.constant 0 : index
    %c0_4 = arith.constant 0 : index
    %2 = vector.load %arg3[%c0_3, %c0_4] : memref<1x128xf32, #tpu.memory_space<vmem>>, vector<1x128xf32>
    %3 = vector.shape_cast %2 : vector<1x128xf32> to vector<1x128xf32>
    %4 = vector.broadcast %3 : vector<1x128xf32> to vector<32x128xf32>
    %c0_5 = arith.constant 0 : index
    %c0_6 = arith.constant 0 : index
    %c0_7 = arith.constant 0 : index
    %5 = vector.load %arg7[%c0_5, %c0_6, %c0_7] : memref<2x8x32xf32, #tpu.memory_space<vmem>>, vector<1x8x32xf32>
    %6 = vector.shape_cast %5 : vector<1x8x32xf32> to vector<8x32xf32>
    %c0_8 = arith.constant 0 : index
    %c0_9 = arith.constant 0 : index
    %c0_10 = arith.constant 0 : index
    %7 = vector.load %arg8[%c0_8, %c0_9, %c0_10] : memref<2x8x32xf32, #tpu.memory_space<vmem>>, vector<1x8x32xf32>
    %8 = vector.shape_cast %7 : vector<1x8x32xf32> to vector<8x32xf32>
    %c0_11 = arith.constant 0 : index
    %c0_12 = arith.constant 0 : index
    %c0_13 = arith.constant 0 : index
    %9 = vector.load %arg0[%c0_11, %c0_12, %c0_13] : memref<8x8x4xf32, #tpu.memory_space<vmem>>, vector<4x8x4xf32>
    %10 = vector.shape_cast %9 : vector<4x8x4xf32> to vector<32x4xf32>
    %cst = arith.constant dense<0.000000e+00> : vector<32x128xf32>
    %11 = tpu.matmul %10, %0, %cst {dimension_numbers = #tpu.dot_dimension_numbers<[1], [0], [0], [1], [0, 0, 1, 1], [], []>} : vector<32x4xf32>, vector<4x128xf32>, vector<32x128xf32> -> vector<32x128xf32>
    %12 = arith.addf %11, %4 : vector<32x128xf32>
    %13 = vector.shape_cast %12 : vector<32x128xf32> to vector<4x8x128xf32>
    %c0_14 = arith.constant 0 : index
    %c0_15 = arith.constant 0 : index
    %c0_16 = arith.constant 0 : index
    %14 = vector.load %arg13[%c0_14, %c0_15, %c0_16] : memref<4x8x128xf32, #tpu.memory_space<vmem>>, vector<4x8x128xf32>
    tpu.vector_store %arg13[%c0_14, %c0_15, %c0_16], %13 {strides = array<i32>} : memref<4x8x128xf32, #tpu.memory_space<vmem>>, vector<4x8x128xf32>,
    %c0_i32 = arith.constant 0 : i32
    %cst_17 = arith.constant dense<0.000000e+00> : vector<8x128xf32>
    %15 = tpu.matmul %6, %1, %cst_17 {dimension_numbers = #tpu.dot_dimension_numbers<[1], [0], [0], [1], [0, 0, 1, 1], [], []>} : vector<8x32xf32>, vector<32x128xf32>, vector<8x128xf32> -> vector<8x128xf32>
    %16 = arith.index_cast %c0_i32 : i32 to index
    %c0_18 = arith.constant 0 : index
    %c0_19 = arith.constant 0 : index
    %17 = vector.load %arg13[%16, %c0_18, %c0_19] : memref<4x8x128xf32, #tpu.memory_space<vmem>>, vector<1x8x128xf32>
    %18 = vector.shape_cast %17 : vector<1x8x128xf32> to vector<8x128xf32>
    %19 = arith.addf %15, %18 : vector<8x128xf32>
    %20 = vector.extract_strided_slice %19 {offsets = [0, 0], sizes = [8, 96], strides = [1, 1]} : vector<8x128xf32> to vector<8x96xf32>
    %21 = arith.negf %20 : vector<8x96xf32>
    %22 = math.exp %21 : vector<8x96xf32>
    %cst_20 = arith.constant 1.000000e+00 : f32
    %23 = vector.broadcast %cst_20 : f32 to vector<8x96xf32>
    %24 = arith.addf %23, %22 : vector<8x96xf32>
    %25 = arith.divf %23, %24 : vector<8x96xf32>
    %26 = vector.extract_strided_slice %25 {offsets = [0, 0], sizes = [8, 32], strides = [1, 1]} : vector<8x96xf32> to vector<8x32xf32>
    %27 = vector.extract_strided_slice %25 {offsets = [0, 32], sizes = [8, 32], strides = [1, 1]} : vector<8x96xf32> to vector<8x32xf32>
    %28 = vector.extract_strided_slice %25 {offsets = [0, 64], sizes = [8, 32], strides = [1, 1]} : vector<8x96xf32> to vector<8x32xf32>
    %29 = vector.extract_strided_slice %19 {offsets = [0, 96], sizes = [8, 32], strides = [1, 1]} : vector<8x128xf32> to vector<8x32xf32>
    %30 = math.tanh %29 : vector<8x32xf32>
    %31 = arith.mulf %27, %8 : vector<8x32xf32>
    %32 = arith.mulf %26, %30 : vector<8x32xf32>
    %33 = arith.addf %31, %32 : vector<8x32xf32>
    %34 = math.tanh %33 : vector<8x32xf32>
    %35 = arith.mulf %28, %34 : vector<8x32xf32>
    %c0_i32_21 = arith.constant 0 : i32
    %36 = arith.addi %c0_i32_21, %c0_i32 : i32
    %37 = arith.index_cast %36 : i32 to index
    %c0_22 = arith.constant 0 : index
    %c0_23 = arith.constant 0 : index
    %38 = vector.load %arg12[%37, %c0_22, %c0_23] : memref<8x8x32xf32, #tpu.memory_space<vmem>>, vector<1x8x32xf32>
    %39 = vector.shape_cast %38 : vector<1x8x32xf32> to vector<8x32xf32>
    %40 = vector.shape_cast %35 : vector<8x32xf32> to vector<1x8x32xf32>
    tpu.vector_store %arg12[%37, %c0_22, %c0_23], %40 {strides = array<i32>} : memref<8x8x32xf32, #tpu.memory_space<vmem>>, vector<1x8x32xf32>,
    %c1_i32 = arith.constant 1 : i32
    %cst_24 = arith.constant dense<0.000000e+00> : vector<8x128xf32>
    %41 = tpu.matmul %35, %1, %cst_24 {dimension_numbers = #tpu.dot_dimension_numbers<[1], [0], [0], [1], [0, 0, 1, 1], [], []>} : vector<8x32xf32>, vector<32x128xf32>, vector<8x128xf32> -> vector<8x128xf32>
    %42 = arith.index_cast %c1_i32 : i32 to index
    %c0_25 = arith.constant 0 : index
    %c0_26 = arith.constant 0 : index
    %43 = vector.load %arg13[%42, %c0_25, %c0_26] : memref<4x8x128xf32, #tpu.memory_space<vmem>>, vector<1x8x128xf32>
    %44 = vector.shape_cast %43 : vector<1x8x128xf32> to vector<8x128xf32>
    %45 = arith.addf %41, %44 : vector<8x128xf32>
    %46 = vector.extract_strided_slice %45 {offsets = [0, 0], sizes = [8, 96], strides = [1, 1]} : vector<8x128xf32> to vector<8x96xf32>
    %47 = arith.negf %46 : vector<8x96xf32>
    %48 = math.exp %47 : vector<8x96xf32>
    %cst_27 = arith.constant 1.000000e+00 : f32
    %49 = vector.broadcast %cst_27 : f32 to vector<8x96xf32>
    %50 = arith.addf %49, %48 : vector<8x96xf32>
    %51 = arith.divf %49, %50 : vector<8x96xf32>
    %52 = vector.extract_strided_slice %51 {offsets = [0, 0], sizes = [8, 32], strides = [1, 1]} : vector<8x96xf32> to vector<8x32xf32>
    %53 = vector.extract_strided_slice %51 {offsets = [0, 32], sizes = [8, 32], strides = [1, 1]} : vector<8x96xf32> to vector<8x32xf32>
    %54 = vector.extract_strided_slice %51 {offsets = [0, 64], sizes = [8, 32], strides = [1, 1]} : vector<8x96xf32> to vector<8x32xf32>
    %55 = vector.extract_strided_slice %45 {offsets = [0, 96], sizes = [8, 32], strides = [1, 1]} : vector<8x128xf32> to vector<8x32xf32>
    %56 = math.tanh %55 : vector<8x32xf32>
    %57 = arith.mulf %53, %33 : vector<8x32xf32>
    %58 = arith.mulf %52, %56 : vector<8x32xf32>
    %59 = arith.addf %57, %58 : vector<8x32xf32>
    %60 = math.tanh %59 : vector<8x32xf32>
    %61 = arith.mulf %54, %60 : vector<8x32xf32>
    %c0_i32_28 = arith.constant 0 : i32
    %62 = arith.addi %c0_i32_28, %c1_i32 : i32
    %63 = arith.index_cast %62 : i32 to index
    %c0_29 = arith.constant 0 : index
    %c0_30 = arith.constant 0 : index
    %64 = vector.load %arg12[%63, %c0_29, %c0_30] : memref<8x8x32xf32, #tpu.memory_space<vmem>>, vector<1x8x32xf32>
    %65 = vector.shape_cast %64 : vector<1x8x32xf32> to vector<8x32xf32>
    %66 = vector.shape_cast %61 : vector<8x32xf32> to vector<1x8x32xf32>
    tpu.vector_store %arg12[%63, %c0_29, %c0_30], %66 {strides = array<i32>} : memref<8x8x32xf32, #tpu.memory_space<vmem>>, vector<1x8x32xf32>,
    %c2_i32 = arith.constant 2 : i32
    %cst_31 = arith.constant dense<0.000000e+00> : vector<8x128xf32>
    %67 = tpu.matmul %61, %1, %cst_31 {dimension_numbers = #tpu.dot_dimension_numbers<[1], [0], [0], [1], [0, 0, 1, 1], [], []>} : vector<8x32xf32>, vector<32x128xf32>, vector<8x128xf32> -> vector<8x128xf32>
    %68 = arith.index_cast %c2_i32 : i32 to index
    %c0_32 = arith.constant 0 : index
    %c0_33 = arith.constant 0 : index
    %69 = vector.load %arg13[%68, %c0_32, %c0_33] : memref<4x8x128xf32, #tpu.memory_space<vmem>>, vector<1x8x128xf32>
    %70 = vector.shape_cast %69 : vector<1x8x128xf32> to vector<8x128xf32>
    %71 = arith.addf %67, %70 : vector<8x128xf32>
    %72 = vector.extract_strided_slice %71 {offsets = [0, 0], sizes = [8, 96], strides = [1, 1]} : vector<8x128xf32> to vector<8x96xf32>
    %73 = arith.negf %72 : vector<8x96xf32>
    %74 = math.exp %73 : vector<8x96xf32>
    %cst_34 = arith.constant 1.000000e+00 : f32
    %75 = vector.broadcast %cst_34 : f32 to vector<8x96xf32>
    %76 = arith.addf %75, %74 : vector<8x96xf32>
    %77 = arith.divf %75, %76 : vector<8x96xf32>
    %78 = vector.extract_strided_slice %77 {offsets = [0, 0], sizes = [8, 32], strides = [1, 1]} : vector<8x96xf32> to vector<8x32xf32>
    %79 = vector.extract_strided_slice %77 {offsets = [0, 32], sizes = [8, 32], strides = [1, 1]} : vector<8x96xf32> to vector<8x32xf32>
    %80 = vector.extract_strided_slice %77 {offsets = [0, 64], sizes = [8, 32], strides = [1, 1]} : vector<8x96xf32> to vector<8x32xf32>
    %81 = vector.extract_strided_slice %71 {offsets = [0, 96], sizes = [8, 32], strides = [1, 1]} : vector<8x128xf32> to vector<8x32xf32>
    %82 = math.tanh %81 : vector<8x32xf32>
    %83 = arith.mulf %79, %59 : vector<8x32xf32>
    %84 = arith.mulf %78, %82 : vector<8x32xf32>
    %85 = arith.addf %83, %84 : vector<8x32xf32>
    %86 = math.tanh %85 : vector<8x32xf32>
    %87 = arith.mulf %80, %86 : vector<8x32xf32>
    %c0_i32_35 = arith.constant 0 : i32
    %88 = arith.addi %c0_i32_35, %c2_i32 : i32
    %89 = arith.index_cast %88 : i32 to index
    %c0_36 = arith.constant 0 : index
    %c0_37 = arith.constant 0 : index
    %90 = vector.load %arg12[%89, %c0_36, %c0_37] : memref<8x8x32xf32, #tpu.memory_space<vmem>>, vector<1x8x32xf32>
    %91 = vector.shape_cast %90 : vector<1x8x32xf32> to vector<8x32xf32>
    %92 = vector.shape_cast %87 : vector<8x32xf32> to vector<1x8x32xf32>
    tpu.vector_store %arg12[%89, %c0_36, %c0_37], %92 {strides = array<i32>} : memref<8x8x32xf32, #tpu.memory_space<vmem>>, vector<1x8x32xf32>,
    %c3_i32 = arith.constant 3 : i32
    %cst_38 = arith.constant dense<0.000000e+00> : vector<8x128xf32>
    %93 = tpu.matmul %87, %1, %cst_38 {dimension_numbers = #tpu.dot_dimension_numbers<[1], [0], [0], [1], [0, 0, 1, 1], [], []>} : vector<8x32xf32>, vector<32x128xf32>, vector<8x128xf32> -> vector<8x128xf32>
    %94 = arith.index_cast %c3_i32 : i32 to index
    %c0_39 = arith.constant 0 : index
    %c0_40 = arith.constant 0 : index
    %95 = vector.load %arg13[%94, %c0_39, %c0_40] : memref<4x8x128xf32, #tpu.memory_space<vmem>>, vector<1x8x128xf32>
    %96 = vector.shape_cast %95 : vector<1x8x128xf32> to vector<8x128xf32>
    %97 = arith.addf %93, %96 : vector<8x128xf32>
    %98 = vector.extract_strided_slice %97 {offsets = [0, 0], sizes = [8, 96], strides = [1, 1]} : vector<8x128xf32> to vector<8x96xf32>
    %99 = arith.negf %98 : vector<8x96xf32>
    %100 = math.exp %99 : vector<8x96xf32>
    %cst_41 = arith.constant 1.000000e+00 : f32
    %101 = vector.broadcast %cst_41 : f32 to vector<8x96xf32>
    %102 = arith.addf %101, %100 : vector<8x96xf32>
    %103 = arith.divf %101, %102 : vector<8x96xf32>
    %104 = vector.extract_strided_slice %103 {offsets = [0, 0], sizes = [8, 32], strides = [1, 1]} : vector<8x96xf32> to vector<8x32xf32>
    %105 = vector.extract_strided_slice %103 {offsets = [0, 32], sizes = [8, 32], strides = [1, 1]} : vector<8x96xf32> to vector<8x32xf32>
    %106 = vector.extract_strided_slice %103 {offsets = [0, 64], sizes = [8, 32], strides = [1, 1]} : vector<8x96xf32> to vector<8x32xf32>
    %107 = vector.extract_strided_slice %97 {offsets = [0, 96], sizes = [8, 32], strides = [1, 1]} : vector<8x128xf32> to vector<8x32xf32>
    %108 = math.tanh %107 : vector<8x32xf32>
    %109 = arith.mulf %105, %85 : vector<8x32xf32>
    %110 = arith.mulf %104, %108 : vector<8x32xf32>
    %111 = arith.addf %109, %110 : vector<8x32xf32>
    %112 = math.tanh %111 : vector<8x32xf32>
    %113 = arith.mulf %106, %112 : vector<8x32xf32>
    %c0_i32_42 = arith.constant 0 : i32
    %114 = arith.addi %c0_i32_42, %c3_i32 : i32
    %115 = arith.index_cast %114 : i32 to index
    %c0_43 = arith.constant 0 : index
    %c0_44 = arith.constant 0 : index
    %116 = vector.load %arg12[%115, %c0_43, %c0_44] : memref<8x8x32xf32, #tpu.memory_space<vmem>>, vector<1x8x32xf32>
    %117 = vector.shape_cast %116 : vector<1x8x32xf32> to vector<8x32xf32>
    %118 = vector.shape_cast %113 : vector<8x32xf32> to vector<1x8x32xf32>
    tpu.vector_store %arg12[%115, %c0_43, %c0_44], %118 {strides = array<i32>} : memref<8x8x32xf32, #tpu.memory_space<vmem>>, vector<1x8x32xf32>,
    %c4_i32 = arith.constant 4 : i32
    %c4 = arith.constant 4 : index
    %c0_45 = arith.constant 0 : index
    %c0_46 = arith.constant 0 : index
    %119 = vector.load %arg0[%c4, %c0_45, %c0_46] : memref<8x8x4xf32, #tpu.memory_space<vmem>>, vector<4x8x4xf32>
    %120 = vector.shape_cast %119 : vector<4x8x4xf32> to vector<32x4xf32>
    %cst_47 = arith.constant dense<0.000000e+00> : vector<32x128xf32>
    %121 = tpu.matmul %120, %0, %cst_47 {dimension_numbers = #tpu.dot_dimension_numbers<[1], [0], [0], [1], [0, 0, 1, 1], [], []>} : vector<32x4xf32>, vector<4x128xf32>, vector<32x128xf32> -> vector<32x128xf32>
    %122 = arith.addf %121, %4 : vector<32x128xf32>
    %123 = vector.shape_cast %122 : vector<32x128xf32> to vector<4x8x128xf32>
    %c0_48 = arith.constant 0 : index
    %c0_49 = arith.constant 0 : index
    %c0_50 = arith.constant 0 : index
    %124 = vector.load %arg13[%c0_48, %c0_49, %c0_50] : memref<4x8x128xf32, #tpu.memory_space<vmem>>, vector<4x8x128xf32>
    tpu.vector_store %arg13[%c0_48, %c0_49, %c0_50], %123 {strides = array<i32>} : memref<4x8x128xf32, #tpu.memory_space<vmem>>, vector<4x8x128xf32>,
    %c0_i32_51 = arith.constant 0 : i32
    %cst_52 = arith.constant dense<0.000000e+00> : vector<8x128xf32>
    %125 = tpu.matmul %113, %1, %cst_52 {dimension_numbers = #tpu.dot_dimension_numbers<[1], [0], [0], [1], [0, 0, 1, 1], [], []>} : vector<8x32xf32>, vector<32x128xf32>, vector<8x128xf32> -> vector<8x128xf32>
    %126 = arith.index_cast %c0_i32_51 : i32 to index
    %c0_53 = arith.constant 0 : index
    %c0_54 = arith.constant 0 : index
    %127 = vector.load %arg13[%126, %c0_53, %c0_54] : memref<4x8x128xf32, #tpu.memory_space<vmem>>, vector<1x8x128xf32>
    %128 = vector.shape_cast %127 : vector<1x8x128xf32> to vector<8x128xf32>
    %129 = arith.addf %125, %128 : vector<8x128xf32>
    %130 = vector.extract_strided_slice %129 {offsets = [0, 0], sizes = [8, 96], strides = [1, 1]} : vector<8x128xf32> to vector<8x96xf32>
    %131 = arith.negf %130 : vector<8x96xf32>
    %132 = math.exp %131 : vector<8x96xf32>
    %cst_55 = arith.constant 1.000000e+00 : f32
    %133 = vector.broadcast %cst_55 : f32 to vector<8x96xf32>
    %134 = arith.addf %133, %132 : vector<8x96xf32>
    %135 = arith.divf %133, %134 : vector<8x96xf32>
    %136 = vector.extract_strided_slice %135 {offsets = [0, 0], sizes = [8, 32], strides = [1, 1]} : vector<8x96xf32> to vector<8x32xf32>
    %137 = vector.extract_strided_slice %135 {offsets = [0, 32], sizes = [8, 32], strides = [1, 1]} : vector<8x96xf32> to vector<8x32xf32>
    %138 = vector.extract_strided_slice %135 {offsets = [0, 64], sizes = [8, 32], strides = [1, 1]} : vector<8x96xf32> to vector<8x32xf32>
    %139 = vector.extract_strided_slice %129 {offsets = [0, 96], sizes = [8, 32], strides = [1, 1]} : vector<8x128xf32> to vector<8x32xf32>
    %140 = math.tanh %139 : vector<8x32xf32>
    %141 = arith.mulf %137, %111 : vector<8x32xf32>
    %142 = arith.mulf %136, %140 : vector<8x32xf32>
    %143 = arith.addf %141, %142 : vector<8x32xf32>
    %144 = math.tanh %143 : vector<8x32xf32>
    %145 = arith.mulf %138, %144 : vector<8x32xf32>
    %c4_i32_56 = arith.constant 4 : i32
    %146 = arith.addi %c4_i32_56, %c0_i32_51 : i32
    %147 = arith.index_cast %146 : i32 to index
    %c0_57 = arith.constant 0 : index
    %c0_58 = arith.constant 0 : index
    %148 = vector.load %arg12[%147, %c0_57, %c0_58] : memref<8x8x32xf32, #tpu.memory_space<vmem>>, vector<1x8x32xf32>
    %149 = vector.shape_cast %148 : vector<1x8x32xf32> to vector<8x32xf32>
    %150 = vector.shape_cast %145 : vector<8x32xf32> to vector<1x8x32xf32>
    tpu.vector_store %arg12[%147, %c0_57, %c0_58], %150 {strides = array<i32>} : memref<8x8x32xf32, #tpu.memory_space<vmem>>, vector<1x8x32xf32>,
    %c1_i32_59 = arith.constant 1 : i32
    %cst_60 = arith.constant dense<0.000000e+00> : vector<8x128xf32>
    %151 = tpu.matmul %145, %1, %cst_60 {dimension_numbers = #tpu.dot_dimension_numbers<[1], [0], [0], [1], [0, 0, 1, 1], [], []>} : vector<8x32xf32>, vector<32x128xf32>, vector<8x128xf32> -> vector<8x128xf32>
    %152 = arith.index_cast %c1_i32_59 : i32 to index
    %c0_61 = arith.constant 0 : index
    %c0_62 = arith.constant 0 : index
    %153 = vector.load %arg13[%152, %c0_61, %c0_62] : memref<4x8x128xf32, #tpu.memory_space<vmem>>, vector<1x8x128xf32>
    %154 = vector.shape_cast %153 : vector<1x8x128xf32> to vector<8x128xf32>
    %155 = arith.addf %151, %154 : vector<8x128xf32>
    %156 = vector.extract_strided_slice %155 {offsets = [0, 0], sizes = [8, 96], strides = [1, 1]} : vector<8x128xf32> to vector<8x96xf32>
    %157 = arith.negf %156 : vector<8x96xf32>
    %158 = math.exp %157 : vector<8x96xf32>
    %cst_63 = arith.constant 1.000000e+00 : f32
    %159 = vector.broadcast %cst_63 : f32 to vector<8x96xf32>
    %160 = arith.addf %159, %158 : vector<8x96xf32>
    %161 = arith.divf %159, %160 : vector<8x96xf32>
    %162 = vector.extract_strided_slice %161 {offsets = [0, 0], sizes = [8, 32], strides = [1, 1]} : vector<8x96xf32> to vector<8x32xf32>
    %163 = vector.extract_strided_slice %161 {offsets = [0, 32], sizes = [8, 32], strides = [1, 1]} : vector<8x96xf32> to vector<8x32xf32>
    %164 = vector.extract_strided_slice %161 {offsets = [0, 64], sizes = [8, 32], strides = [1, 1]} : vector<8x96xf32> to vector<8x32xf32>
    %165 = vector.extract_strided_slice %155 {offsets = [0, 96], sizes = [8, 32], strides = [1, 1]} : vector<8x128xf32> to vector<8x32xf32>
    %166 = math.tanh %165 : vector<8x32xf32>
    %167 = arith.mulf %163, %143 : vector<8x32xf32>
    %168 = arith.mulf %162, %166 : vector<8x32xf32>
    %169 = arith.addf %167, %168 : vector<8x32xf32>
    %170 = math.tanh %169 : vector<8x32xf32>
    %171 = arith.mulf %164, %170 : vector<8x32xf32>
    %c4_i32_64 = arith.constant 4 : i32
    %172 = arith.addi %c4_i32_64, %c1_i32_59 : i32
    %173 = arith.index_cast %172 : i32 to index
    %c0_65 = arith.constant 0 : index
    %c0_66 = arith.constant 0 : index
    %174 = vector.load %arg12[%173, %c0_65, %c0_66] : memref<8x8x32xf32, #tpu.memory_space<vmem>>, vector<1x8x32xf32>
    %175 = vector.shape_cast %174 : vector<1x8x32xf32> to vector<8x32xf32>
    %176 = vector.shape_cast %171 : vector<8x32xf32> to vector<1x8x32xf32>
    tpu.vector_store %arg12[%173, %c0_65, %c0_66], %176 {strides = array<i32>} : memref<8x8x32xf32, #tpu.memory_space<vmem>>, vector<1x8x32xf32>,
    %c2_i32_67 = arith.constant 2 : i32
    %cst_68 = arith.constant dense<0.000000e+00> : vector<8x128xf32>
    %177 = tpu.matmul %171, %1, %cst_68 {dimension_numbers = #tpu.dot_dimension_numbers<[1], [0], [0], [1], [0, 0, 1, 1], [], []>} : vector<8x32xf32>, vector<32x128xf32>, vector<8x128xf32> -> vector<8x128xf32>
    %178 = arith.index_cast %c2_i32_67 : i32 to index
    %c0_69 = arith.constant 0 : index
    %c0_70 = arith.constant 0 : index
    %179 = vector.load %arg13[%178, %c0_69, %c0_70] : memref<4x8x128xf32, #tpu.memory_space<vmem>>, vector<1x8x128xf32>
    %180 = vector.shape_cast %179 : vector<1x8x128xf32> to vector<8x128xf32>
    %181 = arith.addf %177, %180 : vector<8x128xf32>
    %182 = vector.extract_strided_slice %181 {offsets = [0, 0], sizes = [8, 96], strides = [1, 1]} : vector<8x128xf32> to vector<8x96xf32>
    %183 = arith.negf %182 : vector<8x96xf32>
    %184 = math.exp %183 : vector<8x96xf32>
    %cst_71 = arith.constant 1.000000e+00 : f32
    %185 = vector.broadcast %cst_71 : f32 to vector<8x96xf32>
    %186 = arith.addf %185, %184 : vector<8x96xf32>
    %187 = arith.divf %185, %186 : vector<8x96xf32>
    %188 = vector.extract_strided_slice %187 {offsets = [0, 0], sizes = [8, 32], strides = [1, 1]} : vector<8x96xf32> to vector<8x32xf32>
    %189 = vector.extract_strided_slice %187 {offsets = [0, 32], sizes = [8, 32], strides = [1, 1]} : vector<8x96xf32> to vector<8x32xf32>
    %190 = vector.extract_strided_slice %187 {offsets = [0, 64], sizes = [8, 32], strides = [1, 1]} : vector<8x96xf32> to vector<8x32xf32>
    %191 = vector.extract_strided_slice %181 {offsets = [0, 96], sizes = [8, 32], strides = [1, 1]} : vector<8x128xf32> to vector<8x32xf32>
    %192 = math.tanh %191 : vector<8x32xf32>
    %193 = arith.mulf %189, %169 : vector<8x32xf32>
    %194 = arith.mulf %188, %192 : vector<8x32xf32>
    %195 = arith.addf %193, %194 : vector<8x32xf32>
    %196 = math.tanh %195 : vector<8x32xf32>
    %197 = arith.mulf %190, %196 : vector<8x32xf32>
    %c4_i32_72 = arith.constant 4 : i32
    %198 = arith.addi %c4_i32_72, %c2_i32_67 : i32
    %199 = arith.index_cast %198 : i32 to index
    %c0_73 = arith.constant 0 : index
    %c0_74 = arith.constant 0 : index
    %200 = vector.load %arg12[%199, %c0_73, %c0_74] : memref<8x8x32xf32, #tpu.memory_space<vmem>>, vector<1x8x32xf32>
    %201 = vector.shape_cast %200 : vector<1x8x32xf32> to vector<8x32xf32>
    %202 = vector.shape_cast %197 : vector<8x32xf32> to vector<1x8x32xf32>
    tpu.vector_store %arg12[%199, %c0_73, %c0_74], %202 {strides = array<i32>} : memref<8x8x32xf32, #tpu.memory_space<vmem>>, vector<1x8x32xf32>,
    %c3_i32_75 = arith.constant 3 : i32
    %cst_76 = arith.constant dense<0.000000e+00> : vector<8x128xf32>
    %203 = tpu.matmul %197, %1, %cst_76 {dimension_numbers = #tpu.dot_dimension_numbers<[1], [0], [0], [1], [0, 0, 1, 1], [], []>} : vector<8x32xf32>, vector<32x128xf32>, vector<8x128xf32> -> vector<8x128xf32>
    %204 = arith.index_cast %c3_i32_75 : i32 to index
    %c0_77 = arith.constant 0 : index
    %c0_78 = arith.constant 0 : index
    %205 = vector.load %arg13[%204, %c0_77, %c0_78] : memref<4x8x128xf32, #tpu.memory_space<vmem>>, vector<1x8x128xf32>
    %206 = vector.shape_cast %205 : vector<1x8x128xf32> to vector<8x128xf32>
    %207 = arith.addf %203, %206 : vector<8x128xf32>
    %208 = vector.extract_strided_slice %207 {offsets = [0, 0], sizes = [8, 96], strides = [1, 1]} : vector<8x128xf32> to vector<8x96xf32>
    %209 = arith.negf %208 : vector<8x96xf32>
    %210 = math.exp %209 : vector<8x96xf32>
    %cst_79 = arith.constant 1.000000e+00 : f32
    %211 = vector.broadcast %cst_79 : f32 to vector<8x96xf32>
    %212 = arith.addf %211, %210 : vector<8x96xf32>
    %213 = arith.divf %211, %212 : vector<8x96xf32>
    %214 = vector.extract_strided_slice %213 {offsets = [0, 0], sizes = [8, 32], strides = [1, 1]} : vector<8x96xf32> to vector<8x32xf32>
    %215 = vector.extract_strided_slice %213 {offsets = [0, 32], sizes = [8, 32], strides = [1, 1]} : vector<8x96xf32> to vector<8x32xf32>
    %216 = vector.extract_strided_slice %213 {offsets = [0, 64], sizes = [8, 32], strides = [1, 1]} : vector<8x96xf32> to vector<8x32xf32>
    %217 = vector.extract_strided_slice %207 {offsets = [0, 96], sizes = [8, 32], strides = [1, 1]} : vector<8x128xf32> to vector<8x32xf32>
    %218 = math.tanh %217 : vector<8x32xf32>
    %219 = arith.mulf %215, %195 : vector<8x32xf32>
    %220 = arith.mulf %214, %218 : vector<8x32xf32>
    %221 = arith.addf %219, %220 : vector<8x32xf32>
    %222 = math.tanh %221 : vector<8x32xf32>
    %223 = arith.mulf %216, %222 : vector<8x32xf32>
    %c4_i32_80 = arith.constant 4 : i32
    %224 = arith.addi %c4_i32_80, %c3_i32_75 : i32
    %225 = arith.index_cast %224 : i32 to index
    %c0_81 = arith.constant 0 : index
    %c0_82 = arith.constant 0 : index
    %226 = vector.load %arg12[%225, %c0_81, %c0_82] : memref<8x8x32xf32, #tpu.memory_space<vmem>>, vector<1x8x32xf32>
    %227 = vector.shape_cast %226 : vector<1x8x32xf32> to vector<8x32xf32>
    %228 = vector.shape_cast %223 : vector<8x32xf32> to vector<1x8x32xf32>
    tpu.vector_store %arg12[%225, %c0_81, %c0_82], %228 {strides = array<i32>} : memref<8x8x32xf32, #tpu.memory_space<vmem>>, vector<1x8x32xf32>,
    %c4_i32_83 = arith.constant 4 : i32
    %c0_84 = arith.constant 0 : index
    %c0_85 = arith.constant 0 : index
    %229 = vector.load %arg4[%c0_84, %c0_85] : memref<32x128xf32, #tpu.memory_space<vmem>>, vector<32x128xf32>
    %c0_86 = arith.constant 0 : index
    %c0_87 = arith.constant 0 : index
    %230 = vector.load %arg5[%c0_86, %c0_87] : memref<32x128xf32, #tpu.memory_space<vmem>>, vector<32x128xf32>
    %c0_88 = arith.constant 0 : index
    %c0_89 = arith.constant 0 : index
    %231 = vector.load %arg6[%c0_88, %c0_89] : memref<1x128xf32, #tpu.memory_space<vmem>>, vector<1x128xf32>
    %232 = vector.shape_cast %231 : vector<1x128xf32> to vector<1x128xf32>
    %233 = vector.broadcast %232 : vector<1x128xf32> to vector<32x128xf32>
    %c1 = arith.constant 1 : index
    %c0_90 = arith.constant 0 : index
    %c0_91 = arith.constant 0 : index
    %234 = vector.load %arg7[%c1, %c0_90, %c0_91] : memref<2x8x32xf32, #tpu.memory_space<vmem>>, vector<1x8x32xf32>
    %235 = vector.shape_cast %234 : vector<1x8x32xf32> to vector<8x32xf32>
    %c1_92 = arith.constant 1 : index
    %c0_93 = arith.constant 0 : index
    %c0_94 = arith.constant 0 : index
    %236 = vector.load %arg8[%c1_92, %c0_93, %c0_94] : memref<2x8x32xf32, #tpu.memory_space<vmem>>, vector<1x8x32xf32>
    %237 = vector.shape_cast %236 : vector<1x8x32xf32> to vector<8x32xf32>
    %c0_95 = arith.constant 0 : index
    %c0_96 = arith.constant 0 : index
    %c0_97 = arith.constant 0 : index
    %238 = vector.load %arg12[%c0_95, %c0_96, %c0_97] : memref<8x8x32xf32, #tpu.memory_space<vmem>>, vector<4x8x32xf32>
    %239 = vector.shape_cast %238 : vector<4x8x32xf32> to vector<32x32xf32>
    %cst_98 = arith.constant dense<0.000000e+00> : vector<32x128xf32>
    %240 = tpu.matmul %239, %229, %cst_98 {dimension_numbers = #tpu.dot_dimension_numbers<[1], [0], [0], [1], [0, 0, 1, 1], [], []>} : vector<32x32xf32>, vector<32x128xf32>, vector<32x128xf32> -> vector<32x128xf32>
    %241 = arith.addf %240, %233 : vector<32x128xf32>
    %242 = vector.shape_cast %241 : vector<32x128xf32> to vector<4x8x128xf32>
    %c0_99 = arith.constant 0 : index
    %c0_100 = arith.constant 0 : index
    %c0_101 = arith.constant 0 : index
    %243 = vector.load %arg13[%c0_99, %c0_100, %c0_101] : memref<4x8x128xf32, #tpu.memory_space<vmem>>, vector<4x8x128xf32>
    tpu.vector_store %arg13[%c0_99, %c0_100, %c0_101], %242 {strides = array<i32>} : memref<4x8x128xf32, #tpu.memory_space<vmem>>, vector<4x8x128xf32>,
    %c0_i32_102 = arith.constant 0 : i32
    %cst_103 = arith.constant dense<0.000000e+00> : vector<8x128xf32>
    %244 = tpu.matmul %235, %230, %cst_103 {dimension_numbers = #tpu.dot_dimension_numbers<[1], [0], [0], [1], [0, 0, 1, 1], [], []>} : vector<8x32xf32>, vector<32x128xf32>, vector<8x128xf32> -> vector<8x128xf32>
    %245 = arith.index_cast %c0_i32_102 : i32 to index
    %c0_104 = arith.constant 0 : index
    %c0_105 = arith.constant 0 : index
    %246 = vector.load %arg13[%245, %c0_104, %c0_105] : memref<4x8x128xf32, #tpu.memory_space<vmem>>, vector<1x8x128xf32>
    %247 = vector.shape_cast %246 : vector<1x8x128xf32> to vector<8x128xf32>
    %248 = arith.addf %244, %247 : vector<8x128xf32>
    %249 = vector.extract_strided_slice %248 {offsets = [0, 0], sizes = [8, 96], strides = [1, 1]} : vector<8x128xf32> to vector<8x96xf32>
    %250 = arith.negf %249 : vector<8x96xf32>
    %251 = math.exp %250 : vector<8x96xf32>
    %cst_106 = arith.constant 1.000000e+00 : f32
    %252 = vector.broadcast %cst_106 : f32 to vector<8x96xf32>
    %253 = arith.addf %252, %251 : vector<8x96xf32>
    %254 = arith.divf %252, %253 : vector<8x96xf32>
    %255 = vector.extract_strided_slice %254 {offsets = [0, 0], sizes = [8, 32], strides = [1, 1]} : vector<8x96xf32> to vector<8x32xf32>
    %256 = vector.extract_strided_slice %254 {offsets = [0, 32], sizes = [8, 32], strides = [1, 1]} : vector<8x96xf32> to vector<8x32xf32>
    %257 = vector.extract_strided_slice %254 {offsets = [0, 64], sizes = [8, 32], strides = [1, 1]} : vector<8x96xf32> to vector<8x32xf32>
    %258 = vector.extract_strided_slice %248 {offsets = [0, 96], sizes = [8, 32], strides = [1, 1]} : vector<8x128xf32> to vector<8x32xf32>
    %259 = math.tanh %258 : vector<8x32xf32>
    %260 = arith.mulf %256, %237 : vector<8x32xf32>
    %261 = arith.mulf %255, %259 : vector<8x32xf32>
    %262 = arith.addf %260, %261 : vector<8x32xf32>
    %263 = math.tanh %262 : vector<8x32xf32>
    %264 = arith.mulf %257, %263 : vector<8x32xf32>
    %c1_i32_107 = arith.constant 1 : i32
    %cst_108 = arith.constant dense<0.000000e+00> : vector<8x128xf32>
    %265 = tpu.matmul %264, %230, %cst_108 {dimension_numbers = #tpu.dot_dimension_numbers<[1], [0], [0], [1], [0, 0, 1, 1], [], []>} : vector<8x32xf32>, vector<32x128xf32>, vector<8x128xf32> -> vector<8x128xf32>
    %266 = arith.index_cast %c1_i32_107 : i32 to index
    %c0_109 = arith.constant 0 : index
    %c0_110 = arith.constant 0 : index
    %267 = vector.load %arg13[%266, %c0_109, %c0_110] : memref<4x8x128xf32, #tpu.memory_space<vmem>>, vector<1x8x128xf32>
    %268 = vector.shape_cast %267 : vector<1x8x128xf32> to vector<8x128xf32>
    %269 = arith.addf %265, %268 : vector<8x128xf32>
    %270 = vector.extract_strided_slice %269 {offsets = [0, 0], sizes = [8, 96], strides = [1, 1]} : vector<8x128xf32> to vector<8x96xf32>
    %271 = arith.negf %270 : vector<8x96xf32>
    %272 = math.exp %271 : vector<8x96xf32>
    %cst_111 = arith.constant 1.000000e+00 : f32
    %273 = vector.broadcast %cst_111 : f32 to vector<8x96xf32>
    %274 = arith.addf %273, %272 : vector<8x96xf32>
    %275 = arith.divf %273, %274 : vector<8x96xf32>
    %276 = vector.extract_strided_slice %275 {offsets = [0, 0], sizes = [8, 32], strides = [1, 1]} : vector<8x96xf32> to vector<8x32xf32>
    %277 = vector.extract_strided_slice %275 {offsets = [0, 32], sizes = [8, 32], strides = [1, 1]} : vector<8x96xf32> to vector<8x32xf32>
    %278 = vector.extract_strided_slice %275 {offsets = [0, 64], sizes = [8, 32], strides = [1, 1]} : vector<8x96xf32> to vector<8x32xf32>
    %279 = vector.extract_strided_slice %269 {offsets = [0, 96], sizes = [8, 32], strides = [1, 1]} : vector<8x128xf32> to vector<8x32xf32>
    %280 = math.tanh %279 : vector<8x32xf32>
    %281 = arith.mulf %277, %262 : vector<8x32xf32>
    %282 = arith.mulf %276, %280 : vector<8x32xf32>
    %283 = arith.addf %281, %282 : vector<8x32xf32>
    %284 = math.tanh %283 : vector<8x32xf32>
    %285 = arith.mulf %278, %284 : vector<8x32xf32>
    %c2_i32_112 = arith.constant 2 : i32
    %cst_113 = arith.constant dense<0.000000e+00> : vector<8x128xf32>
    %286 = tpu.matmul %285, %230, %cst_113 {dimension_numbers = #tpu.dot_dimension_numbers<[1], [0], [0], [1], [0, 0, 1, 1], [], []>} : vector<8x32xf32>, vector<32x128xf32>, vector<8x128xf32> -> vector<8x128xf32>
    %287 = arith.index_cast %c2_i32_112 : i32 to index
    %c0_114 = arith.constant 0 : index
    %c0_115 = arith.constant 0 : index
    %288 = vector.load %arg13[%287, %c0_114, %c0_115] : memref<4x8x128xf32, #tpu.memory_space<vmem>>, vector<1x8x128xf32>
    %289 = vector.shape_cast %288 : vector<1x8x128xf32> to vector<8x128xf32>
    %290 = arith.addf %286, %289 : vector<8x128xf32>
    %291 = vector.extract_strided_slice %290 {offsets = [0, 0], sizes = [8, 96], strides = [1, 1]} : vector<8x128xf32> to vector<8x96xf32>
    %292 = arith.negf %291 : vector<8x96xf32>
    %293 = math.exp %292 : vector<8x96xf32>
    %cst_116 = arith.constant 1.000000e+00 : f32
    %294 = vector.broadcast %cst_116 : f32 to vector<8x96xf32>
    %295 = arith.addf %294, %293 : vector<8x96xf32>
    %296 = arith.divf %294, %295 : vector<8x96xf32>
    %297 = vector.extract_strided_slice %296 {offsets = [0, 0], sizes = [8, 32], strides = [1, 1]} : vector<8x96xf32> to vector<8x32xf32>
    %298 = vector.extract_strided_slice %296 {offsets = [0, 32], sizes = [8, 32], strides = [1, 1]} : vector<8x96xf32> to vector<8x32xf32>
    %299 = vector.extract_strided_slice %296 {offsets = [0, 64], sizes = [8, 32], strides = [1, 1]} : vector<8x96xf32> to vector<8x32xf32>
    %300 = vector.extract_strided_slice %290 {offsets = [0, 96], sizes = [8, 32], strides = [1, 1]} : vector<8x128xf32> to vector<8x32xf32>
    %301 = math.tanh %300 : vector<8x32xf32>
    %302 = arith.mulf %298, %283 : vector<8x32xf32>
    %303 = arith.mulf %297, %301 : vector<8x32xf32>
    %304 = arith.addf %302, %303 : vector<8x32xf32>
    %305 = math.tanh %304 : vector<8x32xf32>
    %306 = arith.mulf %299, %305 : vector<8x32xf32>
    %c3_i32_117 = arith.constant 3 : i32
    %cst_118 = arith.constant dense<0.000000e+00> : vector<8x128xf32>
    %307 = tpu.matmul %306, %230, %cst_118 {dimension_numbers = #tpu.dot_dimension_numbers<[1], [0], [0], [1], [0, 0, 1, 1], [], []>} : vector<8x32xf32>, vector<32x128xf32>, vector<8x128xf32> -> vector<8x128xf32>
    %308 = arith.index_cast %c3_i32_117 : i32 to index
    %c0_119 = arith.constant 0 : index
    %c0_120 = arith.constant 0 : index
    %309 = vector.load %arg13[%308, %c0_119, %c0_120] : memref<4x8x128xf32, #tpu.memory_space<vmem>>, vector<1x8x128xf32>
    %310 = vector.shape_cast %309 : vector<1x8x128xf32> to vector<8x128xf32>
    %311 = arith.addf %307, %310 : vector<8x128xf32>
    %312 = vector.extract_strided_slice %311 {offsets = [0, 0], sizes = [8, 96], strides = [1, 1]} : vector<8x128xf32> to vector<8x96xf32>
    %313 = arith.negf %312 : vector<8x96xf32>
    %314 = math.exp %313 : vector<8x96xf32>
    %cst_121 = arith.constant 1.000000e+00 : f32
    %315 = vector.broadcast %cst_121 : f32 to vector<8x96xf32>
    %316 = arith.addf %315, %314 : vector<8x96xf32>
    %317 = arith.divf %315, %316 : vector<8x96xf32>
    %318 = vector.extract_strided_slice %317 {offsets = [0, 0], sizes = [8, 32], strides = [1, 1]} : vector<8x96xf32> to vector<8x32xf32>
    %319 = vector.extract_strided_slice %317 {offsets = [0, 32], sizes = [8, 32], strides = [1, 1]} : vector<8x96xf32> to vector<8x32xf32>
    %320 = vector.extract_strided_slice %317 {offsets = [0, 64], sizes = [8, 32], strides = [1, 1]} : vector<8x96xf32> to vector<8x32xf32>
    %321 = vector.extract_strided_slice %311 {offsets = [0, 96], sizes = [8, 32], strides = [1, 1]} : vector<8x128xf32> to vector<8x32xf32>
    %322 = math.tanh %321 : vector<8x32xf32>
    %323 = arith.mulf %319, %304 : vector<8x32xf32>
    %324 = arith.mulf %318, %322 : vector<8x32xf32>
    %325 = arith.addf %323, %324 : vector<8x32xf32>
    %326 = math.tanh %325 : vector<8x32xf32>
    %327 = arith.mulf %320, %326 : vector<8x32xf32>
    %c4_i32_122 = arith.constant 4 : i32
    %c4_123 = arith.constant 4 : index
    %c0_124 = arith.constant 0 : index
    %c0_125 = arith.constant 0 : index
    %328 = vector.load %arg12[%c4_123, %c0_124, %c0_125] : memref<8x8x32xf32, #tpu.memory_space<vmem>>, vector<4x8x32xf32>
    %329 = vector.shape_cast %328 : vector<4x8x32xf32> to vector<32x32xf32>
    %cst_126 = arith.constant dense<0.000000e+00> : vector<32x128xf32>
    %330 = tpu.matmul %329, %229, %cst_126 {dimension_numbers = #tpu.dot_dimension_numbers<[1], [0], [0], [1], [0, 0, 1, 1], [], []>} : vector<32x32xf32>, vector<32x128xf32>, vector<32x128xf32> -> vector<32x128xf32>
    %331 = arith.addf %330, %233 : vector<32x128xf32>
    %332 = vector.shape_cast %331 : vector<32x128xf32> to vector<4x8x128xf32>
    %c0_127 = arith.constant 0 : index
    %c0_128 = arith.constant 0 : index
    %c0_129 = arith.constant 0 : index
    %333 = vector.load %arg13[%c0_127, %c0_128, %c0_129] : memref<4x8x128xf32, #tpu.memory_space<vmem>>, vector<4x8x128xf32>
    tpu.vector_store %arg13[%c0_127, %c0_128, %c0_129], %332 {strides = array<i32>} : memref<4x8x128xf32, #tpu.memory_space<vmem>>, vector<4x8x128xf32>,
    %c0_i32_130 = arith.constant 0 : i32
    %cst_131 = arith.constant dense<0.000000e+00> : vector<8x128xf32>
    %334 = tpu.matmul %327, %230, %cst_131 {dimension_numbers = #tpu.dot_dimension_numbers<[1], [0], [0], [1], [0, 0, 1, 1], [], []>} : vector<8x32xf32>, vector<32x128xf32>, vector<8x128xf32> -> vector<8x128xf32>
    %335 = arith.index_cast %c0_i32_130 : i32 to index
    %c0_132 = arith.constant 0 : index
    %c0_133 = arith.constant 0 : index
    %336 = vector.load %arg13[%335, %c0_132, %c0_133] : memref<4x8x128xf32, #tpu.memory_space<vmem>>, vector<1x8x128xf32>
    %337 = vector.shape_cast %336 : vector<1x8x128xf32> to vector<8x128xf32>
    %338 = arith.addf %334, %337 : vector<8x128xf32>
    %339 = vector.extract_strided_slice %338 {offsets = [0, 0], sizes = [8, 96], strides = [1, 1]} : vector<8x128xf32> to vector<8x96xf32>
    %340 = arith.negf %339 : vector<8x96xf32>
    %341 = math.exp %340 : vector<8x96xf32>
    %cst_134 = arith.constant 1.000000e+00 : f32
    %342 = vector.broadcast %cst_134 : f32 to vector<8x96xf32>
    %343 = arith.addf %342, %341 : vector<8x96xf32>
    %344 = arith.divf %342, %343 : vector<8x96xf32>
    %345 = vector.extract_strided_slice %344 {offsets = [0, 0], sizes = [8, 32], strides = [1, 1]} : vector<8x96xf32> to vector<8x32xf32>
    %346 = vector.extract_strided_slice %344 {offsets = [0, 32], sizes = [8, 32], strides = [1, 1]} : vector<8x96xf32> to vector<8x32xf32>
    %347 = vector.extract_strided_slice %344 {offsets = [0, 64], sizes = [8, 32], strides = [1, 1]} : vector<8x96xf32> to vector<8x32xf32>
    %348 = vector.extract_strided_slice %338 {offsets = [0, 96], sizes = [8, 32], strides = [1, 1]} : vector<8x128xf32> to vector<8x32xf32>
    %349 = math.tanh %348 : vector<8x32xf32>
    %350 = arith.mulf %346, %325 : vector<8x32xf32>
    %351 = arith.mulf %345, %349 : vector<8x32xf32>
    %352 = arith.addf %350, %351 : vector<8x32xf32>
    %353 = math.tanh %352 : vector<8x32xf32>
    %354 = arith.mulf %347, %353 : vector<8x32xf32>
    %c1_i32_135 = arith.constant 1 : i32
    %cst_136 = arith.constant dense<0.000000e+00> : vector<8x128xf32>
    %355 = tpu.matmul %354, %230, %cst_136 {dimension_numbers = #tpu.dot_dimension_numbers<[1], [0], [0], [1], [0, 0, 1, 1], [], []>} : vector<8x32xf32>, vector<32x128xf32>, vector<8x128xf32> -> vector<8x128xf32>
    %356 = arith.index_cast %c1_i32_135 : i32 to index
    %c0_137 = arith.constant 0 : index
    %c0_138 = arith.constant 0 : index
    %357 = vector.load %arg13[%356, %c0_137, %c0_138] : memref<4x8x128xf32, #tpu.memory_space<vmem>>, vector<1x8x128xf32>
    %358 = vector.shape_cast %357 : vector<1x8x128xf32> to vector<8x128xf32>
    %359 = arith.addf %355, %358 : vector<8x128xf32>
    %360 = vector.extract_strided_slice %359 {offsets = [0, 0], sizes = [8, 96], strides = [1, 1]} : vector<8x128xf32> to vector<8x96xf32>
    %361 = arith.negf %360 : vector<8x96xf32>
    %362 = math.exp %361 : vector<8x96xf32>
    %cst_139 = arith.constant 1.000000e+00 : f32
    %363 = vector.broadcast %cst_139 : f32 to vector<8x96xf32>
    %364 = arith.addf %363, %362 : vector<8x96xf32>
    %365 = arith.divf %363, %364 : vector<8x96xf32>
    %366 = vector.extract_strided_slice %365 {offsets = [0, 0], sizes = [8, 32], strides = [1, 1]} : vector<8x96xf32> to vector<8x32xf32>
    %367 = vector.extract_strided_slice %365 {offsets = [0, 32], sizes = [8, 32], strides = [1, 1]} : vector<8x96xf32> to vector<8x32xf32>
    %368 = vector.extract_strided_slice %365 {offsets = [0, 64], sizes = [8, 32], strides = [1, 1]} : vector<8x96xf32> to vector<8x32xf32>
    %369 = vector.extract_strided_slice %359 {offsets = [0, 96], sizes = [8, 32], strides = [1, 1]} : vector<8x128xf32> to vector<8x32xf32>
    %370 = math.tanh %369 : vector<8x32xf32>
    %371 = arith.mulf %367, %352 : vector<8x32xf32>
    %372 = arith.mulf %366, %370 : vector<8x32xf32>
    %373 = arith.addf %371, %372 : vector<8x32xf32>
    %374 = math.tanh %373 : vector<8x32xf32>
    %375 = arith.mulf %368, %374 : vector<8x32xf32>
    %c2_i32_140 = arith.constant 2 : i32
    %cst_141 = arith.constant dense<0.000000e+00> : vector<8x128xf32>
    %376 = tpu.matmul %375, %230, %cst_141 {dimension_numbers = #tpu.dot_dimension_numbers<[1], [0], [0], [1], [0, 0, 1, 1], [], []>} : vector<8x32xf32>, vector<32x128xf32>, vector<8x128xf32> -> vector<8x128xf32>
    %377 = arith.index_cast %c2_i32_140 : i32 to index
    %c0_142 = arith.constant 0 : index
    %c0_143 = arith.constant 0 : index
    %378 = vector.load %arg13[%377, %c0_142, %c0_143] : memref<4x8x128xf32, #tpu.memory_space<vmem>>, vector<1x8x128xf32>
    %379 = vector.shape_cast %378 : vector<1x8x128xf32> to vector<8x128xf32>
    %380 = arith.addf %376, %379 : vector<8x128xf32>
    %381 = vector.extract_strided_slice %380 {offsets = [0, 0], sizes = [8, 96], strides = [1, 1]} : vector<8x128xf32> to vector<8x96xf32>
    %382 = arith.negf %381 : vector<8x96xf32>
    %383 = math.exp %382 : vector<8x96xf32>
    %cst_144 = arith.constant 1.000000e+00 : f32
    %384 = vector.broadcast %cst_144 : f32 to vector<8x96xf32>
    %385 = arith.addf %384, %383 : vector<8x96xf32>
    %386 = arith.divf %384, %385 : vector<8x96xf32>
    %387 = vector.extract_strided_slice %386 {offsets = [0, 0], sizes = [8, 32], strides = [1, 1]} : vector<8x96xf32> to vector<8x32xf32>
    %388 = vector.extract_strided_slice %386 {offsets = [0, 32], sizes = [8, 32], strides = [1, 1]} : vector<8x96xf32> to vector<8x32xf32>
    %389 = vector.extract_strided_slice %386 {offsets = [0, 64], sizes = [8, 32], strides = [1, 1]} : vector<8x96xf32> to vector<8x32xf32>
    %390 = vector.extract_strided_slice %380 {offsets = [0, 96], sizes = [8, 32], strides = [1, 1]} : vector<8x128xf32> to vector<8x32xf32>
    %391 = math.tanh %390 : vector<8x32xf32>
    %392 = arith.mulf %388, %373 : vector<8x32xf32>
    %393 = arith.mulf %387, %391 : vector<8x32xf32>
    %394 = arith.addf %392, %393 : vector<8x32xf32>
    %395 = math.tanh %394 : vector<8x32xf32>
    %396 = arith.mulf %389, %395 : vector<8x32xf32>
    %c3_i32_145 = arith.constant 3 : i32
    %cst_146 = arith.constant dense<0.000000e+00> : vector<8x128xf32>
    %397 = tpu.matmul %396, %230, %cst_146 {dimension_numbers = #tpu.dot_dimension_numbers<[1], [0], [0], [1], [0, 0, 1, 1], [], []>} : vector<8x32xf32>, vector<32x128xf32>, vector<8x128xf32> -> vector<8x128xf32>
    %398 = arith.index_cast %c3_i32_145 : i32 to index
    %c0_147 = arith.constant 0 : index
    %c0_148 = arith.constant 0 : index
    %399 = vector.load %arg13[%398, %c0_147, %c0_148] : memref<4x8x128xf32, #tpu.memory_space<vmem>>, vector<1x8x128xf32>
    %400 = vector.shape_cast %399 : vector<1x8x128xf32> to vector<8x128xf32>
    %401 = arith.addf %397, %400 : vector<8x128xf32>
    %402 = vector.extract_strided_slice %401 {offsets = [0, 0], sizes = [8, 96], strides = [1, 1]} : vector<8x128xf32> to vector<8x96xf32>
    %403 = arith.negf %402 : vector<8x96xf32>
    %404 = math.exp %403 : vector<8x96xf32>
    %cst_149 = arith.constant 1.000000e+00 : f32
    %405 = vector.broadcast %cst_149 : f32 to vector<8x96xf32>
    %406 = arith.addf %405, %404 : vector<8x96xf32>
    %407 = arith.divf %405, %406 : vector<8x96xf32>
    %408 = vector.extract_strided_slice %407 {offsets = [0, 0], sizes = [8, 32], strides = [1, 1]} : vector<8x96xf32> to vector<8x32xf32>
    %409 = vector.extract_strided_slice %407 {offsets = [0, 32], sizes = [8, 32], strides = [1, 1]} : vector<8x96xf32> to vector<8x32xf32>
    %410 = vector.extract_strided_slice %407 {offsets = [0, 64], sizes = [8, 32], strides = [1, 1]} : vector<8x96xf32> to vector<8x32xf32>
    %411 = vector.extract_strided_slice %401 {offsets = [0, 96], sizes = [8, 32], strides = [1, 1]} : vector<8x128xf32> to vector<8x32xf32>
    %412 = math.tanh %411 : vector<8x32xf32>
    %413 = arith.mulf %409, %394 : vector<8x32xf32>
    %414 = arith.mulf %408, %412 : vector<8x32xf32>
    %415 = arith.addf %413, %414 : vector<8x32xf32>
    %416 = math.tanh %415 : vector<8x32xf32>
    %417 = arith.mulf %410, %416 : vector<8x32xf32>
    %c4_i32_150 = arith.constant 4 : i32
    %c0_151 = arith.constant 0 : index
    %c0_152 = arith.constant 0 : index
    %418 = vector.load %arg9[%c0_151, %c0_152] : memref<32x4xf32, #tpu.memory_space<vmem>>, vector<32x4xf32>
    %cst_153 = arith.constant dense<0.000000e+00> : vector<8x4xf32>
    %419 = tpu.matmul %417, %418, %cst_153 {dimension_numbers = #tpu.dot_dimension_numbers<[1], [0], [0], [1], [0, 0, 1, 1], [], []>} : vector<8x32xf32>, vector<32x4xf32>, vector<8x4xf32> -> vector<8x4xf32>
    %c0_154 = arith.constant 0 : index
    %c0_155 = arith.constant 0 : index
    %420 = vector.load %arg10[%c0_154, %c0_155] : memref<1x4xf32, #tpu.memory_space<vmem>>, vector<1x4xf32>
    %421 = vector.broadcast %420 : vector<1x4xf32> to vector<8x4xf32>
    %422 = arith.addf %419, %421 : vector<8x4xf32>
    %c0_156 = arith.constant 0 : index
    %c0_157 = arith.constant 0 : index
    %423 = vector.load %arg11[%c0_156, %c0_157] : memref<8x4xf32, #tpu.memory_space<vmem>>, vector<8x4xf32>
    tpu.vector_store %arg11[%c0_156, %c0_157], %422 {strides = array<i32>} : memref<8x4xf32, #tpu.memory_space<vmem>>, vector<8x4xf32>,
    return
  }
}

</mosaic_0001>

<llo_original>
// kernel: lstm_module_forward.1
$region0: #{lstm_module_forward.1}
  #allocation0 [shape = 'u32[]', space=smem, size = 0x4, offset = 0x4, fixed_abs, tag = 'smem constant byte address 0x4 - core index']
  #allocation1 [shape = 'u32[72,128]{1,0:T(1,128)}', space=vmem, size = 0x9000, scoped, tag = 'internal scratch']
  #allocation2 [shape = 'f32[8,8,32]{2,1,0:T(8,128)}', space=vmem, size = 0x8000, scoped, tag = 'scratch operand']
  #allocation3 [shape = 'f32[4,8,128]{2,1,0:T(8,128)}', space=vmem, size = 0x4000, scoped, tag = 'scratch operand']
  %s0 = inlined_call_operand.vmem [shape: f32[8,8,4], index: 0, kind: input, shape index: {}]
  %s1 = inlined_call_operand.vmem [shape: f32[4,128], index: 1, kind: input, shape index: {}]
  %s2 = inlined_call_operand.vmem [shape: f32[32,128], index: 2, kind: input, shape index: {}]
  %s3 = inlined_call_operand.vmem [shape: f32[1,128], index: 3, kind: input, shape index: {}]
  %s4 = inlined_call_operand.vmem [shape: f32[32,128], index: 4, kind: input, shape index: {}]
  %s5 = inlined_call_operand.vmem [shape: f32[32,128], index: 5, kind: input, shape index: {}]
  %s6 = inlined_call_operand.vmem [shape: f32[1,128], index: 6, kind: input, shape index: {}]
  %s7 = inlined_call_operand.vmem [shape: f32[2,8,32], index: 7, kind: input, shape index: {}]
  %s8 = inlined_call_operand.vmem [shape: f32[2,8,32], index: 8, kind: input, shape index: {}]
  %s9 = inlined_call_operand.vmem [shape: f32[32,4], index: 9, kind: input, shape index: {}]
  %s10 = inlined_call_operand.vmem [shape: f32[1,4], index: 10, kind: input, shape index: {}]
  %s11 = inlined_call_operand.vmem [shape: f32[8,4], index: 11, kind: output, shape index: {}]
  %s12 = sld [smem:[#allocation0]]
  $region54: #{lstm_module_forward.1} parent=0
    _
  %s14 = ssub.s32 1, %s12
  %s15 = scalar_select 0, %s14, %s12
  // Predicated region
  $region2: #{lstm_module_forward.1} parent=0 // pred_check
    _
  $region3: #{lstm_module_forward.1} parent=0 // pred_check_branch
    %17 = sbr.rel (0) target = $region5
  $region4: #{lstm_module_forward.1} parent=0 // pred_region
    _
  $region5: #{lstm_module_forward.1} parent=0 // pred_fallthru
    _
  // Predicated region
  $region6: #{lstm_module_forward.1} parent=0 // pred_check
    _
  $region7: #{lstm_module_forward.1} parent=0 // pred_check_branch
    %19 = sbr.rel (0) target = $region9
  $region8: #{lstm_module_forward.1} parent=0 // pred_region
    _
  $region9: #{lstm_module_forward.1} parent=0 // pred_fallthru
    _
  // Predicated region
  $region10: #{lstm_module_forward.1} parent=0 // pred_check
    _
  $region11: #{lstm_module_forward.1} parent=0 // pred_check_branch
    %21 = sbr.rel (0) target = $region13
  $region12: #{lstm_module_forward.1} parent=0 // pred_region
    _
  $region13: #{lstm_module_forward.1} parent=0 // pred_fallthru
    _
  // Predicated region
  $region14: #{lstm_module_forward.1} parent=0 // pred_check
    _
  $region15: #{lstm_module_forward.1} parent=0 // pred_check_branch
    %23 = sbr.rel (0) target = $region17
  $region16: #{lstm_module_forward.1} parent=0 // pred_region
    _
  $region17: #{lstm_module_forward.1} parent=0 // pred_fallthru
    _
  // Predicated region
  $region18: #{lstm_module_forward.1} parent=0 // pred_check
    _
  $region19: #{lstm_module_forward.1} parent=0 // pred_check_branch
    %25 = sbr.rel (0) target = $region21
  $region20: #{lstm_module_forward.1} parent=0 // pred_region
    _
  $region21: #{lstm_module_forward.1} parent=0 // pred_fallthru
    _
  // Predicated region
  $region22: #{lstm_module_forward.1} parent=0 // pred_check
    _
  $region23: #{lstm_module_forward.1} parent=0 // pred_check_branch
    %27 = sbr.rel (0) target = $region25
  $region24: #{lstm_module_forward.1} parent=0 // pred_region
    _
  $region25: #{lstm_module_forward.1} parent=0 // pred_fallthru
    _
  // Predicated region
  $region26: #{lstm_module_forward.1} parent=0 // pred_check
    _
  $region27: #{lstm_module_forward.1} parent=0 // pred_check_branch
    %29 = sbr.rel (0) target = $region29
  $region28: #{lstm_module_forward.1} parent=0 // pred_region
    _
  $region29: #{lstm_module_forward.1} parent=0 // pred_fallthru
    _
  // Predicated region
  $region30: #{lstm_module_forward.1} parent=0 // pred_check
    _
  $region31: #{lstm_module_forward.1} parent=0 // pred_check_branch
    %31 = sbr.rel (0) target = $region33
  $region32: #{lstm_module_forward.1} parent=0 // pred_region
    _
  $region33: #{lstm_module_forward.1} parent=0 // pred_fallthru
    _
  // Predicated region
  $region34: #{lstm_module_forward.1} parent=0 // pred_check
    _
  $region35: #{lstm_module_forward.1} parent=0 // pred_check_branch
    %33 = sbr.rel (0) target = $region37
  $region36: #{lstm_module_forward.1} parent=0 // pred_region
    _
  $region37: #{lstm_module_forward.1} parent=0 // pred_fallthru
    _
  // Predicated region
  $region38: #{lstm_module_forward.1} parent=0 // pred_check
    _
  $region39: #{lstm_module_forward.1} parent=0 // pred_check_branch
    %35 = sbr.rel (0) target = $region41
  $region40: #{lstm_module_forward.1} parent=0 // pred_region
    _
  $region41: #{lstm_module_forward.1} parent=0 // pred_fallthru
    _
  // Predicated region
  $region42: #{lstm_module_forward.1} parent=0 // pred_check
    _
  $region43: #{lstm_module_forward.1} parent=0 // pred_check_branch
    %37 = sbr.rel (0) target = $region45
  $region44: #{lstm_module_forward.1} parent=0 // pred_region
    _
  $region45: #{lstm_module_forward.1} parent=0 // pred_fallthru
    _
  %v38 = vld [vmem:[%s1] sm:$0xf]
  %v39 = vld [vmem:[%s2] sm:$0xff]
  %v40 = vld [vmem:[%s2 + $0x8] sm:$0xff]
  %v41 = vld [vmem:[%s2 + $0x10] sm:$0xff]
  %v42 = vld [vmem:[%s2 + $0x18] sm:$0xff]
  %v43 = vld [vmem:[%s3] sm:$0x1]
  %v45 = vperm.slane %v43, 0
  %v47 = vld [vmem:[%s7] sm:$0xff]
  %v48 = vld [vmem:[%s8] sm:$0xff]
  %v49 = vld [vmem:[%s0] sm:$0xff]
  %v50 = vld [vmem:[%s0 + $0x8] sm:$0xff]
  %v51 = vld [vmem:[%s0 + $0x10] sm:$0xff]
  %v52 = vld [vmem:[%s0 + $0x18] sm:$0xff]
  %vm53 = vcmask 31744
  %v55 = vsel %vm53, %v49, 0
  %v58 = vsel %vm53, %v50, 0
  %v61 = vsel %vm53, %v51, 0
  %v64 = vsel %vm53, %v52, 0
  %vm66 = vcmask 1043456
  %v68 = vsel %vm66, %v38, 0
  %70 = vmatpush.msra.mxu0 0.0
  %71 = vmatpush.msra.mxu0 0.0
  %72 = vmatpush.msra.mxu0 0.0
  %73 = vmatpush.msra.mxu0 0.0
  %74 = vmatpush.msra.mxu0 0.0
  %75 = vmatpush.msra.mxu0 0.0
  %76 = vmatpush.msra.mxu0 0.0
  %77 = vmatpush.msra.mxu0 0.0
  %78 = vmatpush.msra.mxu0 0.0
  %79 = vmatpush.msra.mxu0 0.0
  %80 = vmatpush.msra.mxu0 0.0
  %81 = vmatpush.msra.mxu0 0.0
  %82 = vmatpush.msra.mxu0 0.0
  %83 = vmatpush.msra.mxu0 0.0
  %84 = vmatpush.msra.mxu0 0.0
  %85 = vmatpush.msra.mxu0 %v68
  %86 = vmatmul.f32.gmra.mxu0 %v55
  %v87 = vpop.f32.mrf.mxu0
  %v88 = vadd.f32 %v45, %v87
  %89 = vmatmul.f32.gmra.mxu0 %v58
  %v90 = vpop.f32.mrf.mxu0
  %v91 = vadd.f32 %v45, %v90
  %92 = vmatmul.f32.gmra.mxu0 %v61
  %v93 = vpop.f32.mrf.mxu0
  %v94 = vadd.f32 %v45, %v93
  %95 = vmatmul.f32.gmra.mxu0 %v64
  %v96 = vpop.f32.mrf.mxu0
  %v97 = vadd.f32 %v45, %v96
  %98 = vdwg.mxu0
  %99 = vst [vmem:[#allocation3] sm:$0xff] %v88
  %100 = vst [vmem:[#allocation3 + $0x8] sm:$0xff] %v91
  %101 = vst [vmem:[#allocation3 + $0x10] sm:$0xff] %v94
  %102 = vst [vmem:[#allocation3 + $0x18] sm:$0xff] %v97
  %v103 = vld [vmem:[#allocation3] sm:$0xff]
  %vm104 = vcmask 261120
  %v106 = vsel %vm104, %v47, 0
  %108 = vmatpush.msra.mxu0 0.0
  %109 = vmatpush.msra.mxu0 0.0
  %110 = vmatpush.msra.mxu0 0.0
  %111 = vmatpush.msra.mxu0 0.0
  %112 = vmatpush.msra.mxu0 0.0
  %113 = vmatpush.msra.mxu0 0.0
  %114 = vmatpush.msra.mxu0 0.0
  %115 = vmatpush.msra.mxu0 0.0
  %116 = vmatpush.msra.mxu0 0.0
  %117 = vmatpush.msra.mxu0 0.0
  %118 = vmatpush.msra.mxu0 0.0
  %119 = vmatpush.msra.mxu0 0.0
  %120 = vmatpush.msra.mxu0 %v42
  %121 = vmatpush.msra.mxu0 %v41
  %122 = vmatpush.msra.mxu0 %v40
  %123 = vmatpush.msra.mxu0 %v39
  %124 = vmatmul.f32.gmra.mxu0 %v106
  %v125 = vpop.f32.mrf.mxu0
  %v126 = vadd.f32 %v103, %v125
  %127 = vdwg.mxu0
  %v128 = vxor.u32 %v126, 2147483648
  %v129 = vmul.f32 %v128, 1.442695
  %v130 = vpow.pop %v129
  %v131 = vadd.f32 %v130, 1.0
  %v132 = vrcp.pop %v131
  %v133 = vmul.f32 %v131, %v132
  %v134 = vsub.f32 1.0, %v133
  %v135 = vmul.f32 %v132, %v134
  %v136 = vadd.f32 %v132, %v135
  %vm137 = vweird.f32 %v131
  %vm138 = vweird.f32 %v132
  %vm139 = vmor %vm137, %vm138
  %v140 = vsel %vm139, %v132, %v136
  %v141 = vand.u32 2147483647, %v131
  %vm142 = vcmp.eq.f32.partialorder %v141, 8.507059e+37
  %v143 = vand.u32 %v131, 2147483648
  %v144 = vor.u32 1.1754944e-38, %v143
  %v145 = vsel %vm142, %v144, %v140
  %v146 = vmul.f32 1.0, %v145
  %v147 = vtanh.pop %v126
  %149 = vrot.lane.b32.xlu0 %v48, 32
  %v150 = vpop.permute.xlu0 %149
  %v152 = vmul.f32 %v146, %v150
  %154 = vrot.lane.b32.xlu0 %v147, 32
  %v155 = vpop.permute.xlu0 %154
  %v157 = vmul.f32 %v146, %v155
  %159 = vrot.lane.b32.xlu0 %v157, 32
  %v160 = vpop.permute.xlu0 %159
  %v162 = vadd.f32 %v152, %v160
  %v163 = vtanh.pop %v162
  %165 = vrot.lane.b32.xlu0 %v163, 32
  %v166 = vpop.permute.xlu0 %165
  %v168 = vmul.f32 %v146, %v166
  %170 = vrot.lane.b32.xlu0 %v168, 64
  %v171 = vpop.permute.xlu0 %170
  %173 = vst.msk [vmem:[#allocation2] sm:$0xff] %vm104, %v171
  %s174 = scalar_lea.vmem [#allocation3], 8
  %v175 = vld [vmem:[%s174] sm:$0xff]
  %v176 = vsel %vm104, %v171, 0
  %178 = vmatpush.msra.mxu0 0.0
  %179 = vmatpush.msra.mxu0 0.0
  %180 = vmatpush.msra.mxu0 0.0
  %181 = vmatpush.msra.mxu0 0.0
  %182 = vmatpush.msra.mxu0 0.0
  %183 = vmatpush.msra.mxu0 0.0
  %184 = vmatpush.msra.mxu0 0.0
  %185 = vmatpush.msra.mxu0 0.0
  %186 = vmatpush.msra.mxu0 0.0
  %187 = vmatpush.msra.mxu0 0.0
  %188 = vmatpush.msra.mxu0 0.0
  %189 = vmatpush.msra.mxu0 0.0
  %190 = vmatpush.msra.mxu0 %v42
  %191 = vmatpush.msra.mxu0 %v41
  %192 = vmatpush.msra.mxu0 %v40
  %193 = vmatpush.msra.mxu0 %v39
  %194 = vmatmul.f32.gmra.mxu0 %v176
  %v195 = vpop.f32.mrf.mxu0
  %v196 = vadd.f32 %v175, %v195
  %197 = vdwg.mxu0
  %v198 = vxor.u32 %v196, 2147483648
  %v199 = vmul.f32 %v198, 1.442695
  %v200 = vpow.pop %v199
  %v201 = vadd.f32 %v200, 1.0
  %v202 = vrcp.pop %v201
  %v203 = vmul.f32 %v201, %v202
  %v204 = vsub.f32 1.0, %v203
  %v205 = vmul.f32 %v202, %v204
  %v206 = vadd.f32 %v202, %v205
  %vm207 = vweird.f32 %v201
  %vm208 = vweird.f32 %v202
  %vm209 = vmor %vm207, %vm208
  %v210 = vsel %vm209, %v202, %v206
  %v211 = vand.u32 2147483647, %v201
  %vm212 = vcmp.eq.f32.partialorder %v211, 8.507059e+37
  %v213 = vand.u32 %v201, 2147483648
  %v214 = vor.u32 1.1754944e-38, %v213
  %v215 = vsel %vm212, %v214, %v210
  %v216 = vmul.f32 1.0, %v215
  %v217 = vtanh.pop %v196
  %v218 = vmul.f32 %v216, %v162
  %220 = vrot.lane.b32.xlu0 %v217, 32
  %v221 = vpop.permute.xlu0 %220
  %v223 = vmul.f32 %v216, %v221
  %225 = vrot.lane.b32.xlu0 %v223, 32
  %v226 = vpop.permute.xlu0 %225
  %v228 = vadd.f32 %v218, %v226
  %v229 = vtanh.pop %v228
  %231 = vrot.lane.b32.xlu0 %v229, 32
  %v232 = vpop.permute.xlu0 %231
  %v234 = vmul.f32 %v216, %v232
  %236 = vrot.lane.b32.xlu0 %v234, 64
  %v237 = vpop.permute.xlu0 %236
  %s239 = scalar_lea.vmem [#allocation2], 8
  %240 = vst.msk [vmem:[%s239] sm:$0xff] %vm104, %v237
  %s241 = scalar_lea.vmem [#allocation3], 16
  %v242 = vld [vmem:[%s241] sm:$0xff]
  %v243 = vsel %vm104, %v237, 0
  %245 = vmatpush.msra.mxu0 0.0
  %246 = vmatpush.msra.mxu0 0.0
  %247 = vmatpush.msra.mxu0 0.0
  %248 = vmatpush.msra.mxu0 0.0
  %249 = vmatpush.msra.mxu0 0.0
  %250 = vmatpush.msra.mxu0 0.0
  %251 = vmatpush.msra.mxu0 0.0
  %252 = vmatpush.msra.mxu0 0.0
  %253 = vmatpush.msra.mxu0 0.0
  %254 = vmatpush.msra.mxu0 0.0
  %255 = vmatpush.msra.mxu0 0.0
  %256 = vmatpush.msra.mxu0 0.0
  %257 = vmatpush.msra.mxu0 %v42
  %258 = vmatpush.msra.mxu0 %v41
  %259 = vmatpush.msra.mxu0 %v40
  %260 = vmatpush.msra.mxu0 %v39
  %261 = vmatmul.f32.gmra.mxu0 %v243
  %v262 = vpop.f32.mrf.mxu0
  %v263 = vadd.f32 %v242, %v262
  %264 = vdwg.mxu0
  %v265 = vxor.u32 %v263, 2147483648
  %v266 = vmul.f32 %v265, 1.442695
  %v267 = vpow.pop %v266
  %v268 = vadd.f32 %v267, 1.0
  %v269 = vrcp.pop %v268
  %v270 = vmul.f32 %v268, %v269
  %v271 = vsub.f32 1.0, %v270
  %v272 = vmul.f32 %v269, %v271
  %v273 = vadd.f32 %v269, %v272
  %vm274 = vweird.f32 %v268
  %vm275 = vweird.f32 %v269
  %vm276 = vmor %vm274, %vm275
  %v277 = vsel %vm276, %v269, %v273
  %v278 = vand.u32 2147483647, %v268
  %vm279 = vcmp.eq.f32.partialorder %v278, 8.507059e+37
  %v280 = vand.u32 %v268, 2147483648
  %v281 = vor.u32 1.1754944e-38, %v280
  %v282 = vsel %vm279, %v281, %v277
  %v283 = vmul.f32 1.0, %v282
  %v284 = vtanh.pop %v263
  %v285 = vmul.f32 %v283, %v228
  %287 = vrot.lane.b32.xlu0 %v284, 32
  %v288 = vpop.permute.xlu0 %287
  %v290 = vmul.f32 %v283, %v288
  %292 = vrot.lane.b32.xlu0 %v290, 32
  %v293 = vpop.permute.xlu0 %292
  %v295 = vadd.f32 %v285, %v293
  %v296 = vtanh.pop %v295
  %298 = vrot.lane.b32.xlu0 %v296, 32
  %v299 = vpop.permute.xlu0 %298
  %v301 = vmul.f32 %v283, %v299
  %303 = vrot.lane.b32.xlu0 %v301, 64
  %v304 = vpop.permute.xlu0 %303
  %s306 = scalar_lea.vmem [#allocation2], 16
  %307 = vst.msk [vmem:[%s306] sm:$0xff] %vm104, %v304
  %s308 = scalar_lea.vmem [#allocation3], 24
  %v309 = vld [vmem:[%s308] sm:$0xff]
  %v310 = vsel %vm104, %v304, 0
  %312 = vmatpush.msra.mxu0 0.0
  %313 = vmatpush.msra.mxu0 0.0
  %314 = vmatpush.msra.mxu0 0.0
  %315 = vmatpush.msra.mxu0 0.0
  %316 = vmatpush.msra.mxu0 0.0
  %317 = vmatpush.msra.mxu0 0.0
  %318 = vmatpush.msra.mxu0 0.0
  %319 = vmatpush.msra.mxu0 0.0
  %320 = vmatpush.msra.mxu0 0.0
  %321 = vmatpush.msra.mxu0 0.0
  %322 = vmatpush.msra.mxu0 0.0
  %323 = vmatpush.msra.mxu0 0.0
  %324 = vmatpush.msra.mxu0 %v42
  %325 = vmatpush.msra.mxu0 %v41
  %326 = vmatpush.msra.mxu0 %v40
  %327 = vmatpush.msra.mxu0 %v39
  %328 = vmatmul.f32.gmra.mxu0 %v310
  %v329 = vpop.f32.mrf.mxu0
  %v330 = vadd.f32 %v309, %v329
  %331 = vdwg.mxu0
  %v332 = vxor.u32 %v330, 2147483648
  %v333 = vmul.f32 %v332, 1.442695
  %v334 = vpow.pop %v333
  %v335 = vadd.f32 %v334, 1.0
  %v336 = vrcp.pop %v335
  %v337 = vmul.f32 %v335, %v336
  %v338 = vsub.f32 1.0, %v337
  %v339 = vmul.f32 %v336, %v338
  %v340 = vadd.f32 %v336, %v339
  %vm341 = vweird.f32 %v335
  %vm342 = vweird.f32 %v336
  %vm343 = vmor %vm341, %vm342
  %v344 = vsel %vm343, %v336, %v340
  %v345 = vand.u32 2147483647, %v335
  %vm346 = vcmp.eq.f32.partialorder %v345, 8.507059e+37
  %v347 = vand.u32 %v335, 2147483648
  %v348 = vor.u32 1.1754944e-38, %v347
  %v349 = vsel %vm346, %v348, %v344
  %v350 = vmul.f32 1.0, %v349
  %v351 = vtanh.pop %v330
  %v352 = vmul.f32 %v350, %v295
  %354 = vrot.lane.b32.xlu0 %v351, 32
  %v355 = vpop.permute.xlu0 %354
  %v357 = vmul.f32 %v350, %v355
  %359 = vrot.lane.b32.xlu0 %v357, 32
  %v360 = vpop.permute.xlu0 %359
  %v362 = vadd.f32 %v352, %v360
  %v363 = vtanh.pop %v362
  %365 = vrot.lane.b32.xlu0 %v363, 32
  %v366 = vpop.permute.xlu0 %365
  %v368 = vmul.f32 %v350, %v366
  %370 = vrot.lane.b32.xlu0 %v368, 64
  %v371 = vpop.permute.xlu0 %370
  %s373 = scalar_lea.vmem [#allocation2], 24
  %374 = vst.msk [vmem:[%s373] sm:$0xff] %vm104, %v371
  %s375 = scalar_lea.vmem %s0, 32
  %v376 = vld [vmem:[%s375] sm:$0xff]
  %v377 = vld [vmem:[%s375 + $0x8] sm:$0xff]
  %v378 = vld [vmem:[%s375 + $0x10] sm:$0xff]
  %v379 = vld [vmem:[%s375 + $0x18] sm:$0xff]
  %v381 = vsel %vm53, %v376, 0
  %v384 = vsel %vm53, %v377, 0
  %v387 = vsel %vm53, %v378, 0
  %v390 = vsel %vm53, %v379, 0
  %392 = vmatpush.msra.mxu0 0.0
  %393 = vmatpush.msra.mxu0 0.0
  %394 = vmatpush.msra.mxu0 0.0
  %395 = vmatpush.msra.mxu0 0.0
  %396 = vmatpush.msra.mxu0 0.0
  %397 = vmatpush.msra.mxu0 0.0
  %398 = vmatpush.msra.mxu0 0.0
  %399 = vmatpush.msra.mxu0 0.0
  %400 = vmatpush.msra.mxu0 0.0
  %401 = vmatpush.msra.mxu0 0.0
  %402 = vmatpush.msra.mxu0 0.0
  %403 = vmatpush.msra.mxu0 0.0
  %404 = vmatpush.msra.mxu0 0.0
  %405 = vmatpush.msra.mxu0 0.0
  %406 = vmatpush.msra.mxu0 0.0
  %407 = vmatpush.msra.mxu0 %v68
  %408 = vmatmul.f32.gmra.mxu0 %v381
  %v409 = vpop.f32.mrf.mxu0
  %v410 = vadd.f32 %v45, %v409
  %411 = vmatmul.f32.gmra.mxu0 %v384
  %v412 = vpop.f32.mrf.mxu0
  %v413 = vadd.f32 %v45, %v412
  %414 = vmatmul.f32.gmra.mxu0 %v387
  %v415 = vpop.f32.mrf.mxu0
  %v416 = vadd.f32 %v45, %v415
  %417 = vmatmul.f32.gmra.mxu0 %v390
  %v418 = vpop.f32.mrf.mxu0
  %v419 = vadd.f32 %v45, %v418
  %420 = vdwg.mxu0
  %421 = vst [vmem:[#allocation3] sm:$0xff] %v410
  %422 = vst [vmem:[#allocation3 + $0x8] sm:$0xff] %v413
  %423 = vst [vmem:[#allocation3 + $0x10] sm:$0xff] %v416
  %424 = vst [vmem:[#allocation3 + $0x18] sm:$0xff] %v419
  %v425 = vld [vmem:[#allocation3] sm:$0xff]
  %v426 = vsel %vm104, %v371, 0
  %428 = vmatpush.msra.mxu0 0.0
  %429 = vmatpush.msra.mxu0 0.0
  %430 = vmatpush.msra.mxu0 0.0
  %431 = vmatpush.msra.mxu0 0.0
  %432 = vmatpush.msra.mxu0 0.0
  %433 = vmatpush.msra.mxu0 0.0
  %434 = vmatpush.msra.mxu0 0.0
  %435 = vmatpush.msra.mxu0 0.0
  %436 = vmatpush.msra.mxu0 0.0
  %437 = vmatpush.msra.mxu0 0.0
  %438 = vmatpush.msra.mxu0 0.0
  %439 = vmatpush.msra.mxu0 0.0
  %440 = vmatpush.msra.mxu0 %v42
  %441 = vmatpush.msra.mxu0 %v41
  %442 = vmatpush.msra.mxu0 %v40
  %443 = vmatpush.msra.mxu0 %v39
  %444 = vmatmul.f32.gmra.mxu0 %v426
  %v445 = vpop.f32.mrf.mxu0
  %v446 = vadd.f32 %v425, %v445
  %447 = vdwg.mxu0
  %v448 = vxor.u32 %v446, 2147483648
  %v449 = vmul.f32 %v448, 1.442695
  %v450 = vpow.pop %v449
  %v451 = vadd.f32 %v450, 1.0
  %v452 = vrcp.pop %v451
  %v453 = vmul.f32 %v451, %v452
  %v454 = vsub.f32 1.0, %v453
  %v455 = vmul.f32 %v452, %v454
  %v456 = vadd.f32 %v452, %v455
  %vm457 = vweird.f32 %v451
  %vm458 = vweird.f32 %v452
  %vm459 = vmor %vm457, %vm458
  %v460 = vsel %vm459, %v452, %v456
  %v461 = vand.u32 2147483647, %v451
  %vm462 = vcmp.eq.f32.partialorder %v461, 8.507059e+37
  %v463 = vand.u32 %v451, 2147483648
  %v464 = vor.u32 1.1754944e-38, %v463
  %v465 = vsel %vm462, %v464, %v460
  %v466 = vmul.f32 1.0, %v465
  %v467 = vtanh.pop %v446
  %v468 = vmul.f32 %v466, %v362
  %470 = vrot.lane.b32.xlu0 %v467, 32
  %v471 = vpop.permute.xlu0 %470
  %v473 = vmul.f32 %v466, %v471
  %475 = vrot.lane.b32.xlu0 %v473, 32
  %v476 = vpop.permute.xlu0 %475
  %v478 = vadd.f32 %v468, %v476
  %v479 = vtanh.pop %v478
  %481 = vrot.lane.b32.xlu0 %v479, 32
  %v482 = vpop.permute.xlu0 %481
  %v484 = vmul.f32 %v466, %v482
  %486 = vrot.lane.b32.xlu0 %v484, 64
  %v487 = vpop.permute.xlu0 %486
  %s489 = scalar_lea.vmem [#allocation2], 32
  %490 = vst.msk [vmem:[%s489] sm:$0xff] %vm104, %v487
  %v491 = vld [vmem:[%s174] sm:$0xff]
  %v492 = vsel %vm104, %v487, 0
  %494 = vmatpush.msra.mxu0 0.0
  %495 = vmatpush.msra.mxu0 0.0
  %496 = vmatpush.msra.mxu0 0.0
  %497 = vmatpush.msra.mxu0 0.0
  %498 = vmatpush.msra.mxu0 0.0
  %499 = vmatpush.msra.mxu0 0.0
  %500 = vmatpush.msra.mxu0 0.0
  %501 = vmatpush.msra.mxu0 0.0
  %502 = vmatpush.msra.mxu0 0.0
  %503 = vmatpush.msra.mxu0 0.0
  %504 = vmatpush.msra.mxu0 0.0
  %505 = vmatpush.msra.mxu0 0.0
  %506 = vmatpush.msra.mxu0 %v42
  %507 = vmatpush.msra.mxu0 %v41
  %508 = vmatpush.msra.mxu0 %v40
  %509 = vmatpush.msra.mxu0 %v39
  %510 = vmatmul.f32.gmra.mxu0 %v492
  %v511 = vpop.f32.mrf.mxu0
  %v512 = vadd.f32 %v491, %v511
  %513 = vdwg.mxu0
  %v514 = vxor.u32 %v512, 2147483648
  %v515 = vmul.f32 %v514, 1.442695
  %v516 = vpow.pop %v515
  %v517 = vadd.f32 %v516, 1.0
  %v518 = vrcp.pop %v517
  %v519 = vmul.f32 %v517, %v518
  %v520 = vsub.f32 1.0, %v519
  %v521 = vmul.f32 %v518, %v520
  %v522 = vadd.f32 %v518, %v521
  %vm523 = vweird.f32 %v517
  %vm524 = vweird.f32 %v518
  %vm525 = vmor %vm523, %vm524
  %v526 = vsel %vm525, %v518, %v522
  %v527 = vand.u32 2147483647, %v517
  %vm528 = vcmp.eq.f32.partialorder %v527, 8.507059e+37
  %v529 = vand.u32 %v517, 2147483648
  %v530 = vor.u32 1.1754944e-38, %v529
  %v531 = vsel %vm528, %v530, %v526
  %v532 = vmul.f32 1.0, %v531
  %v533 = vtanh.pop %v512
  %v534 = vmul.f32 %v532, %v478
  %536 = vrot.lane.b32.xlu0 %v533, 32
  %v537 = vpop.permute.xlu0 %536
  %v539 = vmul.f32 %v532, %v537
  %541 = vrot.lane.b32.xlu0 %v539, 32
  %v542 = vpop.permute.xlu0 %541
  %v544 = vadd.f32 %v534, %v542
  %v545 = vtanh.pop %v544
  %547 = vrot.lane.b32.xlu0 %v545, 32
  %v548 = vpop.permute.xlu0 %547
  %v550 = vmul.f32 %v532, %v548
  %552 = vrot.lane.b32.xlu0 %v550, 64
  %v553 = vpop.permute.xlu0 %552
  %s555 = scalar_lea.vmem [#allocation2], 40
  %556 = vst.msk [vmem:[%s555] sm:$0xff] %vm104, %v553
  %v557 = vld [vmem:[%s241] sm:$0xff]
  %v558 = vsel %vm104, %v553, 0
  %560 = vmatpush.msra.mxu0 0.0
  %561 = vmatpush.msra.mxu0 0.0
  %562 = vmatpush.msra.mxu0 0.0
  %563 = vmatpush.msra.mxu0 0.0
  %564 = vmatpush.msra.mxu0 0.0
  %565 = vmatpush.msra.mxu0 0.0
  %566 = vmatpush.msra.mxu0 0.0
  %567 = vmatpush.msra.mxu0 0.0
  %568 = vmatpush.msra.mxu0 0.0
  %569 = vmatpush.msra.mxu0 0.0
  %570 = vmatpush.msra.mxu0 0.0
  %571 = vmatpush.msra.mxu0 0.0
  %572 = vmatpush.msra.mxu0 %v42
  %573 = vmatpush.msra.mxu0 %v41
  %574 = vmatpush.msra.mxu0 %v40
  %575 = vmatpush.msra.mxu0 %v39
  %576 = vmatmul.f32.gmra.mxu0 %v558
  %v577 = vpop.f32.mrf.mxu0
  %v578 = vadd.f32 %v557, %v577
  %579 = vdwg.mxu0
  %v580 = vxor.u32 %v578, 2147483648
  %v581 = vmul.f32 %v580, 1.442695
  %v582 = vpow.pop %v581
  %v583 = vadd.f32 %v582, 1.0
  %v584 = vrcp.pop %v583
  %v585 = vmul.f32 %v583, %v584
  %v586 = vsub.f32 1.0, %v585
  %v587 = vmul.f32 %v584, %v586
  %v588 = vadd.f32 %v584, %v587
  %vm589 = vweird.f32 %v583
  %vm590 = vweird.f32 %v584
  %vm591 = vmor %vm589, %vm590
  %v592 = vsel %vm591, %v584, %v588
  %v593 = vand.u32 2147483647, %v583
  %vm594 = vcmp.eq.f32.partialorder %v593, 8.507059e+37
  %v595 = vand.u32 %v583, 2147483648
  %v596 = vor.u32 1.1754944e-38, %v595
  %v597 = vsel %vm594, %v596, %v592
  %v598 = vmul.f32 1.0, %v597
  %v599 = vtanh.pop %v578
  %v600 = vmul.f32 %v598, %v544
  %602 = vrot.lane.b32.xlu0 %v599, 32
  %v603 = vpop.permute.xlu0 %602
  %v605 = vmul.f32 %v598, %v603
  %607 = vrot.lane.b32.xlu0 %v605, 32
  %v608 = vpop.permute.xlu0 %607
  %v610 = vadd.f32 %v600, %v608
  %v611 = vtanh.pop %v610
  %613 = vrot.lane.b32.xlu0 %v611, 32
  %v614 = vpop.permute.xlu0 %613
  %v616 = vmul.f32 %v598, %v614
  %618 = vrot.lane.b32.xlu0 %v616, 64
  %v619 = vpop.permute.xlu0 %618
  %s621 = scalar_lea.vmem [#allocation2], 48
  %622 = vst.msk [vmem:[%s621] sm:$0xff] %vm104, %v619
  %v623 = vld [vmem:[%s308] sm:$0xff]
  %v624 = vsel %vm104, %v619, 0
  %626 = vmatpush.msra.mxu0 0.0
  %627 = vmatpush.msra.mxu0 0.0
  %628 = vmatpush.msra.mxu0 0.0
  %629 = vmatpush.msra.mxu0 0.0
  %630 = vmatpush.msra.mxu0 0.0
  %631 = vmatpush.msra.mxu0 0.0
  %632 = vmatpush.msra.mxu0 0.0
  %633 = vmatpush.msra.mxu0 0.0
  %634 = vmatpush.msra.mxu0 0.0
  %635 = vmatpush.msra.mxu0 0.0
  %636 = vmatpush.msra.mxu0 0.0
  %637 = vmatpush.msra.mxu0 0.0
  %638 = vmatpush.msra.mxu0 %v42
  %639 = vmatpush.msra.mxu0 %v41
  %640 = vmatpush.msra.mxu0 %v40
  %641 = vmatpush.msra.mxu0 %v39
  %642 = vmatmul.f32.gmra.mxu0 %v624
  %v643 = vpop.f32.mrf.mxu0
  %v644 = vadd.f32 %v623, %v643
  %645 = vdwg.mxu0
  %v646 = vxor.u32 %v644, 2147483648
  %v647 = vmul.f32 %v646, 1.442695
  %v648 = vpow.pop %v647
  %v649 = vadd.f32 %v648, 1.0
  %v650 = vrcp.pop %v649
  %v651 = vmul.f32 %v649, %v650
  %v652 = vsub.f32 1.0, %v651
  %v653 = vmul.f32 %v650, %v652
  %v654 = vadd.f32 %v650, %v653
  %vm655 = vweird.f32 %v649
  %vm656 = vweird.f32 %v650
  %vm657 = vmor %vm655, %vm656
  %v658 = vsel %vm657, %v650, %v654
  %v659 = vand.u32 2147483647, %v649
  %vm660 = vcmp.eq.f32.partialorder %v659, 8.507059e+37
  %v661 = vand.u32 %v649, 2147483648
  %v662 = vor.u32 1.1754944e-38, %v661
  %v663 = vsel %vm660, %v662, %v658
  %v664 = vmul.f32 1.0, %v663
  %v665 = vtanh.pop %v644
  %v666 = vmul.f32 %v664, %v610
  %668 = vrot.lane.b32.xlu0 %v665, 32
  %v669 = vpop.permute.xlu0 %668
  %v671 = vmul.f32 %v664, %v669
  %673 = vrot.lane.b32.xlu0 %v671, 32
  %v674 = vpop.permute.xlu0 %673
  %v676 = vadd.f32 %v666, %v674
  %v677 = vtanh.pop %v676
  %679 = vrot.lane.b32.xlu0 %v677, 32
  %v680 = vpop.permute.xlu0 %679
  %v682 = vmul.f32 %v664, %v680
  %684 = vrot.lane.b32.xlu0 %v682, 64
  %v685 = vpop.permute.xlu0 %684
  %s687 = scalar_lea.vmem [#allocation2], 56
  %688 = vst.msk [vmem:[%s687] sm:$0xff] %vm104, %v685
  %v689 = vld [vmem:[%s4] sm:$0xff]
  %v690 = vld [vmem:[%s4 + $0x8] sm:$0xff]
  %v691 = vld [vmem:[%s4 + $0x10] sm:$0xff]
  %v692 = vld [vmem:[%s4 + $0x18] sm:$0xff]
  %v693 = vld [vmem:[%s5] sm:$0xff]
  %v694 = vld [vmem:[%s5 + $0x8] sm:$0xff]
  %v695 = vld [vmem:[%s5 + $0x10] sm:$0xff]
  %v696 = vld [vmem:[%s5 + $0x18] sm:$0xff]
  %v697 = vld [vmem:[%s6] sm:$0x1]
  %v699 = vperm.slane %v697, 0
  %s701 = scalar_lea.vmem %s7, 8
  %v702 = vld [vmem:[%s701] sm:$0xff]
  %s703 = scalar_lea.vmem %s8, 8
  %v704 = vld [vmem:[%s703] sm:$0xff]
  %v705 = vld [vmem:[#allocation2] sm:$0xff]
  %v706 = vld [vmem:[#allocation2 + $0x8] sm:$0xff]
  %v707 = vld [vmem:[#allocation2 + $0x10] sm:$0xff]
  %v708 = vld [vmem:[#allocation2 + $0x18] sm:$0xff]
  %v710 = vsel %vm104, %v705, 0
  %v713 = vsel %vm104, %v706, 0
  %v716 = vsel %vm104, %v707, 0
  %v719 = vsel %vm104, %v708, 0
  %721 = vmatpush.msra.mxu0 0.0
  %722 = vmatpush.msra.mxu0 0.0
  %723 = vmatpush.msra.mxu0 0.0
  %724 = vmatpush.msra.mxu0 0.0
  %725 = vmatpush.msra.mxu0 0.0
  %726 = vmatpush.msra.mxu0 0.0
  %727 = vmatpush.msra.mxu0 0.0
  %728 = vmatpush.msra.mxu0 0.0
  %729 = vmatpush.msra.mxu0 0.0
  %730 = vmatpush.msra.mxu0 0.0
  %731 = vmatpush.msra.mxu0 0.0
  %732 = vmatpush.msra.mxu0 0.0
  %733 = vmatpush.msra.mxu0 %v692
  %734 = vmatpush.msra.mxu0 %v691
  %735 = vmatpush.msra.mxu0 %v690
  %736 = vmatpush.msra.mxu0 %v689
  %737 = vmatmul.f32.gmra.mxu0 %v710
  %v738 = vpop.f32.mrf.mxu0
  %v739 = vadd.f32 %v699, %v738
  %740 = vmatmul.f32.gmra.mxu0 %v713
  %v741 = vpop.f32.mrf.mxu0
  %v742 = vadd.f32 %v699, %v741
  %743 = vmatmul.f32.gmra.mxu0 %v716
  %v744 = vpop.f32.mrf.mxu0
  %v745 = vadd.f32 %v699, %v744
  %746 = vmatmul.f32.gmra.mxu0 %v719
  %v747 = vpop.f32.mrf.mxu0
  %v748 = vadd.f32 %v699, %v747
  %749 = vdwg.mxu0
  %750 = vst [vmem:[#allocation3] sm:$0xff] %v739
  %751 = vst [vmem:[#allocation3 + $0x8] sm:$0xff] %v742
  %752 = vst [vmem:[#allocation3 + $0x10] sm:$0xff] %v745
  %753 = vst [vmem:[#allocation3 + $0x18] sm:$0xff] %v748
  %v754 = vld [vmem:[#allocation3] sm:$0xff]
  %v756 = vsel %vm104, %v702, 0
  %758 = vmatpush.msra.mxu0 0.0
  %759 = vmatpush.msra.mxu0 0.0
  %760 = vmatpush.msra.mxu0 0.0
  %761 = vmatpush.msra.mxu0 0.0
  %762 = vmatpush.msra.mxu0 0.0
  %763 = vmatpush.msra.mxu0 0.0
  %764 = vmatpush.msra.mxu0 0.0
  %765 = vmatpush.msra.mxu0 0.0
  %766 = vmatpush.msra.mxu0 0.0
  %767 = vmatpush.msra.mxu0 0.0
  %768 = vmatpush.msra.mxu0 0.0
  %769 = vmatpush.msra.mxu0 0.0
  %770 = vmatpush.msra.mxu0 %v696
  %771 = vmatpush.msra.mxu0 %v695
  %772 = vmatpush.msra.mxu0 %v694
  %773 = vmatpush.msra.mxu0 %v693
  %774 = vmatmul.f32.gmra.mxu0 %v756
  %v775 = vpop.f32.mrf.mxu0
  %v776 = vadd.f32 %v754, %v775
  %777 = vdwg.mxu0
  %v778 = vxor.u32 %v776, 2147483648
  %v779 = vmul.f32 %v778, 1.442695
  %v780 = vpow.pop %v779
  %v781 = vadd.f32 %v780, 1.0
  %v782 = vrcp.pop %v781
  %v783 = vmul.f32 %v781, %v782
  %v784 = vsub.f32 1.0, %v783
  %v785 = vmul.f32 %v782, %v784
  %v786 = vadd.f32 %v782, %v785
  %vm787 = vweird.f32 %v781
  %vm788 = vweird.f32 %v782
  %vm789 = vmor %vm787, %vm788
  %v790 = vsel %vm789, %v782, %v786
  %v791 = vand.u32 2147483647, %v781
  %vm792 = vcmp.eq.f32.partialorder %v791, 8.507059e+37
  %v793 = vand.u32 %v781, 2147483648
  %v794 = vor.u32 1.1754944e-38, %v793
  %v795 = vsel %vm792, %v794, %v790
  %v796 = vmul.f32 1.0, %v795
  %v797 = vtanh.pop %v776
  %799 = vrot.lane.b32.xlu0 %v704, 32
  %v800 = vpop.permute.xlu0 %799
  %v802 = vmul.f32 %v796, %v800
  %804 = vrot.lane.b32.xlu0 %v797, 32
  %v805 = vpop.permute.xlu0 %804
  %v807 = vmul.f32 %v796, %v805
  %809 = vrot.lane.b32.xlu0 %v807, 32
  %v810 = vpop.permute.xlu0 %809
  %v812 = vadd.f32 %v802, %v810
  %v813 = vtanh.pop %v812
  %815 = vrot.lane.b32.xlu0 %v813, 32
  %v816 = vpop.permute.xlu0 %815
  %v818 = vmul.f32 %v796, %v816
  %v819 = vld [vmem:[%s174] sm:$0xff]
  %821 = vrot.lane.b32.xlu0 %v818, 64
  %v822 = vpop.permute.xlu0 %821
  %v823 = vsel %vm104, %v822, 0
  %825 = vmatpush.msra.mxu0 0.0
  %826 = vmatpush.msra.mxu0 0.0
  %827 = vmatpush.msra.mxu0 0.0
  %828 = vmatpush.msra.mxu0 0.0
  %829 = vmatpush.msra.mxu0 0.0
  %830 = vmatpush.msra.mxu0 0.0
  %831 = vmatpush.msra.mxu0 0.0
  %832 = vmatpush.msra.mxu0 0.0
  %833 = vmatpush.msra.mxu0 0.0
  %834 = vmatpush.msra.mxu0 0.0
  %835 = vmatpush.msra.mxu0 0.0
  %836 = vmatpush.msra.mxu0 0.0
  %837 = vmatpush.msra.mxu0 %v696
  %838 = vmatpush.msra.mxu0 %v695
  %839 = vmatpush.msra.mxu0 %v694
  %840 = vmatpush.msra.mxu0 %v693
  %841 = vmatmul.f32.gmra.mxu0 %v823
  %v842 = vpop.f32.mrf.mxu0
  %v843 = vadd.f32 %v819, %v842
  %844 = vdwg.mxu0
  %v845 = vxor.u32 %v843, 2147483648
  %v846 = vmul.f32 %v845, 1.442695
  %v847 = vpow.pop %v846
  %v848 = vadd.f32 %v847, 1.0
  %v849 = vrcp.pop %v848
  %v850 = vmul.f32 %v848, %v849
  %v851 = vsub.f32 1.0, %v850
  %v852 = vmul.f32 %v849, %v851
  %v853 = vadd.f32 %v849, %v852
  %vm854 = vweird.f32 %v848
  %vm855 = vweird.f32 %v849
  %vm856 = vmor %vm854, %vm855
  %v857 = vsel %vm856, %v849, %v853
  %v858 = vand.u32 2147483647, %v848
  %vm859 = vcmp.eq.f32.partialorder %v858, 8.507059e+37
  %v860 = vand.u32 %v848, 2147483648
  %v861 = vor.u32 1.1754944e-38, %v860
  %v862 = vsel %vm859, %v861, %v857
  %v863 = vmul.f32 1.0, %v862
  %v864 = vtanh.pop %v843
  %v865 = vmul.f32 %v863, %v812
  %867 = vrot.lane.b32.xlu0 %v864, 32
  %v868 = vpop.permute.xlu0 %867
  %v870 = vmul.f32 %v863, %v868
  %872 = vrot.lane.b32.xlu0 %v870, 32
  %v873 = vpop.permute.xlu0 %872
  %v875 = vadd.f32 %v865, %v873
  %v876 = vtanh.pop %v875
  %878 = vrot.lane.b32.xlu0 %v876, 32
  %v879 = vpop.permute.xlu0 %878
  %v881 = vmul.f32 %v863, %v879
  %v882 = vld [vmem:[%s241] sm:$0xff]
  %884 = vrot.lane.b32.xlu0 %v881, 64
  %v885 = vpop.permute.xlu0 %884
  %v886 = vsel %vm104, %v885, 0
  %888 = vmatpush.msra.mxu0 0.0
  %889 = vmatpush.msra.mxu0 0.0
  %890 = vmatpush.msra.mxu0 0.0
  %891 = vmatpush.msra.mxu0 0.0
  %892 = vmatpush.msra.mxu0 0.0
  %893 = vmatpush.msra.mxu0 0.0
  %894 = vmatpush.msra.mxu0 0.0
  %895 = vmatpush.msra.mxu0 0.0
  %896 = vmatpush.msra.mxu0 0.0
  %897 = vmatpush.msra.mxu0 0.0
  %898 = vmatpush.msra.mxu0 0.0
  %899 = vmatpush.msra.mxu0 0.0
  %900 = vmatpush.msra.mxu0 %v696
  %901 = vmatpush.msra.mxu0 %v695
  %902 = vmatpush.msra.mxu0 %v694
  %903 = vmatpush.msra.mxu0 %v693
  %904 = vmatmul.f32.gmra.mxu0 %v886
  %v905 = vpop.f32.mrf.mxu0
  %v906 = vadd.f32 %v882, %v905
  %907 = vdwg.mxu0
  %v908 = vxor.u32 %v906, 2147483648
  %v909 = vmul.f32 %v908, 1.442695
  %v910 = vpow.pop %v909
  %v911 = vadd.f32 %v910, 1.0
  %v912 = vrcp.pop %v911
  %v913 = vmul.f32 %v911, %v912
  %v914 = vsub.f32 1.0, %v913
  %v915 = vmul.f32 %v912, %v914
  %v916 = vadd.f32 %v912, %v915
  %vm917 = vweird.f32 %v911
  %vm918 = vweird.f32 %v912
  %vm919 = vmor %vm917, %vm918
  %v920 = vsel %vm919, %v912, %v916
  %v921 = vand.u32 2147483647, %v911
  %vm922 = vcmp.eq.f32.partialorder %v921, 8.507059e+37
  %v923 = vand.u32 %v911, 2147483648
  %v924 = vor.u32 1.1754944e-38, %v923
  %v925 = vsel %vm922, %v924, %v920
  %v926 = vmul.f32 1.0, %v925
  %v927 = vtanh.pop %v906
  %v928 = vmul.f32 %v926, %v875
  %930 = vrot.lane.b32.xlu0 %v927, 32
  %v931 = vpop.permute.xlu0 %930
  %v933 = vmul.f32 %v926, %v931
  %935 = vrot.lane.b32.xlu0 %v933, 32
  %v936 = vpop.permute.xlu0 %935
  %v938 = vadd.f32 %v928, %v936
  %v939 = vtanh.pop %v938
  %941 = vrot.lane.b32.xlu0 %v939, 32
  %v942 = vpop.permute.xlu0 %941
  %v944 = vmul.f32 %v926, %v942
  %v945 = vld [vmem:[%s308] sm:$0xff]
  %947 = vrot.lane.b32.xlu0 %v944, 64
  %v948 = vpop.permute.xlu0 %947
  %v949 = vsel %vm104, %v948, 0
  %951 = vmatpush.msra.mxu0 0.0
  %952 = vmatpush.msra.mxu0 0.0
  %953 = vmatpush.msra.mxu0 0.0
  %954 = vmatpush.msra.mxu0 0.0
  %955 = vmatpush.msra.mxu0 0.0
  %956 = vmatpush.msra.mxu0 0.0
  %957 = vmatpush.msra.mxu0 0.0
  %958 = vmatpush.msra.mxu0 0.0
  %959 = vmatpush.msra.mxu0 0.0
  %960 = vmatpush.msra.mxu0 0.0
  %961 = vmatpush.msra.mxu0 0.0
  %962 = vmatpush.msra.mxu0 0.0
  %963 = vmatpush.msra.mxu0 %v696
  %964 = vmatpush.msra.mxu0 %v695
  %965 = vmatpush.msra.mxu0 %v694
  %966 = vmatpush.msra.mxu0 %v693
  %967 = vmatmul.f32.gmra.mxu0 %v949
  %v968 = vpop.f32.mrf.mxu0
  %v969 = vadd.f32 %v945, %v968
  %970 = vdwg.mxu0
  %v971 = vxor.u32 %v969, 2147483648
  %v972 = vmul.f32 %v971, 1.442695
  %v973 = vpow.pop %v972
  %v974 = vadd.f32 %v973, 1.0
  %v975 = vrcp.pop %v974
  %v976 = vmul.f32 %v974, %v975
  %v977 = vsub.f32 1.0, %v976
  %v978 = vmul.f32 %v975, %v977
  %v979 = vadd.f32 %v975, %v978
  %vm980 = vweird.f32 %v974
  %vm981 = vweird.f32 %v975
  %vm982 = vmor %vm980, %vm981
  %v983 = vsel %vm982, %v975, %v979
  %v984 = vand.u32 2147483647, %v974
  %vm985 = vcmp.eq.f32.partialorder %v984, 8.507059e+37
  %v986 = vand.u32 %v974, 2147483648
  %v987 = vor.u32 1.1754944e-38, %v986
  %v988 = vsel %vm985, %v987, %v983
  %v989 = vmul.f32 1.0, %v988
  %v990 = vtanh.pop %v969
  %v991 = vmul.f32 %v989, %v938
  %993 = vrot.lane.b32.xlu0 %v990, 32
  %v994 = vpop.permute.xlu0 %993
  %v996 = vmul.f32 %v989, %v994
  %998 = vrot.lane.b32.xlu0 %v996, 32
  %v999 = vpop.permute.xlu0 %998
  %v1001 = vadd.f32 %v991, %v999
  %v1002 = vtanh.pop %v1001
  %1004 = vrot.lane.b32.xlu0 %v1002, 32
  %v1005 = vpop.permute.xlu0 %1004
  %v1007 = vmul.f32 %v989, %v1005
  %v1008 = vld [vmem:[%s489] sm:$0xff]
  %v1009 = vld [vmem:[%s489 + $0x8] sm:$0xff]
  %v1010 = vld [vmem:[%s489 + $0x10] sm:$0xff]
  %v1011 = vld [vmem:[%s489 + $0x18] sm:$0xff]
  %v1013 = vsel %vm104, %v1008, 0
  %v1016 = vsel %vm104, %v1009, 0
  %v1019 = vsel %vm104, %v1010, 0
  %v1022 = vsel %vm104, %v1011, 0
  %1024 = vmatpush.msra.mxu0 0.0
  %1025 = vmatpush.msra.mxu0 0.0
  %1026 = vmatpush.msra.mxu0 0.0
  %1027 = vmatpush.msra.mxu0 0.0
  %1028 = vmatpush.msra.mxu0 0.0
  %1029 = vmatpush.msra.mxu0 0.0
  %1030 = vmatpush.msra.mxu0 0.0
  %1031 = vmatpush.msra.mxu0 0.0
  %1032 = vmatpush.msra.mxu0 0.0
  %1033 = vmatpush.msra.mxu0 0.0
  %1034 = vmatpush.msra.mxu0 0.0
  %1035 = vmatpush.msra.mxu0 0.0
  %1036 = vmatpush.msra.mxu0 %v692
  %1037 = vmatpush.msra.mxu0 %v691
  %1038 = vmatpush.msra.mxu0 %v690
  %1039 = vmatpush.msra.mxu0 %v689
  %1040 = vmatmul.f32.gmra.mxu0 %v1013
  %v1041 = vpop.f32.mrf.mxu0
  %v1042 = vadd.f32 %v699, %v1041
  %1043 = vmatmul.f32.gmra.mxu0 %v1016
  %v1044 = vpop.f32.mrf.mxu0
  %v1045 = vadd.f32 %v699, %v1044
  %1046 = vmatmul.f32.gmra.mxu0 %v1019
  %v1047 = vpop.f32.mrf.mxu0
  %v1048 = vadd.f32 %v699, %v1047
  %1049 = vmatmul.f32.gmra.mxu0 %v1022
  %v1050 = vpop.f32.mrf.mxu0
  %v1051 = vadd.f32 %v699, %v1050
  %1052 = vdwg.mxu0
  %1053 = vst [vmem:[#allocation3] sm:$0xff] %v1042
  %1054 = vst [vmem:[#allocation3 + $0x8] sm:$0xff] %v1045
  %1055 = vst [vmem:[#allocation3 + $0x10] sm:$0xff] %v1048
  %1056 = vst [vmem:[#allocation3 + $0x18] sm:$0xff] %v1051
  %v1057 = vld [vmem:[#allocation3] sm:$0xff]
  %1059 = vrot.lane.b32.xlu0 %v1007, 64
  %v1060 = vpop.permute.xlu0 %1059
  %v1061 = vsel %vm104, %v1060, 0
  %1063 = vmatpush.msra.mxu0 0.0
  %1064 = vmatpush.msra.mxu0 0.0
  %1065 = vmatpush.msra.mxu0 0.0
  %1066 = vmatpush.msra.mxu0 0.0
  %1067 = vmatpush.msra.mxu0 0.0
  %1068 = vmatpush.msra.mxu0 0.0
  %1069 = vmatpush.msra.mxu0 0.0
  %1070 = vmatpush.msra.mxu0 0.0
  %1071 = vmatpush.msra.mxu0 0.0
  %1072 = vmatpush.msra.mxu0 0.0
  %1073 = vmatpush.msra.mxu0 0.0
  %1074 = vmatpush.msra.mxu0 0.0
  %1075 = vmatpush.msra.mxu0 %v696
  %1076 = vmatpush.msra.mxu0 %v695
  %1077 = vmatpush.msra.mxu0 %v694
  %1078 = vmatpush.msra.mxu0 %v693
  %1079 = vmatmul.f32.gmra.mxu0 %v1061
  %v1080 = vpop.f32.mrf.mxu0
  %v1081 = vadd.f32 %v1057, %v1080
  %1082 = vdwg.mxu0
  %v1083 = vxor.u32 %v1081, 2147483648
  %v1084 = vmul.f32 %v1083, 1.442695
  %v1085 = vpow.pop %v1084
  %v1086 = vadd.f32 %v1085, 1.0
  %v1087 = vrcp.pop %v1086
  %v1088 = vmul.f32 %v1086, %v1087
  %v1089 = vsub.f32 1.0, %v1088
  %v1090 = vmul.f32 %v1087, %v1089
  %v1091 = vadd.f32 %v1087, %v1090
  %vm1092 = vweird.f32 %v1086
  %vm1093 = vweird.f32 %v1087
  %vm1094 = vmor %vm1092, %vm1093
  %v1095 = vsel %vm1094, %v1087, %v1091
  %v1096 = vand.u32 2147483647, %v1086
  %vm1097 = vcmp.eq.f32.partialorder %v1096, 8.507059e+37
  %v1098 = vand.u32 %v1086, 2147483648
  %v1099 = vor.u32 1.1754944e-38, %v1098
  %v1100 = vsel %vm1097, %v1099, %v1095
  %v1101 = vmul.f32 1.0, %v1100
  %v1102 = vtanh.pop %v1081
  %v1103 = vmul.f32 %v1101, %v1001
  %1105 = vrot.lane.b32.xlu0 %v1102, 32
  %v1106 = vpop.permute.xlu0 %1105
  %v1108 = vmul.f32 %v1101, %v1106
  %1110 = vrot.lane.b32.xlu0 %v1108, 32
  %v1111 = vpop.permute.xlu0 %1110
  %v1113 = vadd.f32 %v1103, %v1111
  %v1114 = vtanh.pop %v1113
  %1116 = vrot.lane.b32.xlu0 %v1114, 32
  %v1117 = vpop.permute.xlu0 %1116
  %v1119 = vmul.f32 %v1101, %v1117
  %v1120 = vld [vmem:[%s174] sm:$0xff]
  %1122 = vrot.lane.b32.xlu0 %v1119, 64
  %v1123 = vpop.permute.xlu0 %1122
  %v1124 = vsel %vm104, %v1123, 0
  %1126 = vmatpush.msra.mxu0 0.0
  %1127 = vmatpush.msra.mxu0 0.0
  %1128 = vmatpush.msra.mxu0 0.0
  %1129 = vmatpush.msra.mxu0 0.0
  %1130 = vmatpush.msra.mxu0 0.0
  %1131 = vmatpush.msra.mxu0 0.0
  %1132 = vmatpush.msra.mxu0 0.0
  %1133 = vmatpush.msra.mxu0 0.0
  %1134 = vmatpush.msra.mxu0 0.0
  %1135 = vmatpush.msra.mxu0 0.0
  %1136 = vmatpush.msra.mxu0 0.0
  %1137 = vmatpush.msra.mxu0 0.0
  %1138 = vmatpush.msra.mxu0 %v696
  %1139 = vmatpush.msra.mxu0 %v695
  %1140 = vmatpush.msra.mxu0 %v694
  %1141 = vmatpush.msra.mxu0 %v693
  %1142 = vmatmul.f32.gmra.mxu0 %v1124
  %v1143 = vpop.f32.mrf.mxu0
  %v1144 = vadd.f32 %v1120, %v1143
  %1145 = vdwg.mxu0
  %v1146 = vxor.u32 %v1144, 2147483648
  %v1147 = vmul.f32 %v1146, 1.442695
  %v1148 = vpow.pop %v1147
  %v1149 = vadd.f32 %v1148, 1.0
  %v1150 = vrcp.pop %v1149
  %v1151 = vmul.f32 %v1149, %v1150
  %v1152 = vsub.f32 1.0, %v1151
  %v1153 = vmul.f32 %v1150, %v1152
  %v1154 = vadd.f32 %v1150, %v1153
  %vm1155 = vweird.f32 %v1149
  %vm1156 = vweird.f32 %v1150
  %vm1157 = vmor %vm1155, %vm1156
  %v1158 = vsel %vm1157, %v1150, %v1154
  %v1159 = vand.u32 2147483647, %v1149
  %vm1160 = vcmp.eq.f32.partialorder %v1159, 8.507059e+37
  %v1161 = vand.u32 %v1149, 2147483648
  %v1162 = vor.u32 1.1754944e-38, %v1161
  %v1163 = vsel %vm1160, %v1162, %v1158
  %v1164 = vmul.f32 1.0, %v1163
  %v1165 = vtanh.pop %v1144
  %v1166 = vmul.f32 %v1164, %v1113
  %1168 = vrot.lane.b32.xlu0 %v1165, 32
  %v1169 = vpop.permute.xlu0 %1168
  %v1171 = vmul.f32 %v1164, %v1169
  %1173 = vrot.lane.b32.xlu0 %v1171, 32
  %v1174 = vpop.permute.xlu0 %1173
  %v1176 = vadd.f32 %v1166, %v1174
  %v1177 = vtanh.pop %v1176
  %1179 = vrot.lane.b32.xlu0 %v1177, 32
  %v1180 = vpop.permute.xlu0 %1179
  %v1182 = vmul.f32 %v1164, %v1180
  %v1183 = vld [vmem:[%s241] sm:$0xff]
  %1185 = vrot.lane.b32.xlu0 %v1182, 64
  %v1186 = vpop.permute.xlu0 %1185
  %v1187 = vsel %vm104, %v1186, 0
  %1189 = vmatpush.msra.mxu0 0.0
  %1190 = vmatpush.msra.mxu0 0.0
  %1191 = vmatpush.msra.mxu0 0.0
  %1192 = vmatpush.msra.mxu0 0.0
  %1193 = vmatpush.msra.mxu0 0.0
  %1194 = vmatpush.msra.mxu0 0.0
  %1195 = vmatpush.msra.mxu0 0.0
  %1196 = vmatpush.msra.mxu0 0.0
  %1197 = vmatpush.msra.mxu0 0.0
  %1198 = vmatpush.msra.mxu0 0.0
  %1199 = vmatpush.msra.mxu0 0.0
  %1200 = vmatpush.msra.mxu0 0.0
  %1201 = vmatpush.msra.mxu0 %v696
  %1202 = vmatpush.msra.mxu0 %v695
  %1203 = vmatpush.msra.mxu0 %v694
  %1204 = vmatpush.msra.mxu0 %v693
  %1205 = vmatmul.f32.gmra.mxu0 %v1187
  %v1206 = vpop.f32.mrf.mxu0
  %v1207 = vadd.f32 %v1183, %v1206
  %1208 = vdwg.mxu0
  %v1209 = vxor.u32 %v1207, 2147483648
  %v1210 = vmul.f32 %v1209, 1.442695
  %v1211 = vpow.pop %v1210
  %v1212 = vadd.f32 %v1211, 1.0
  %v1213 = vrcp.pop %v1212
  %v1214 = vmul.f32 %v1212, %v1213
  %v1215 = vsub.f32 1.0, %v1214
  %v1216 = vmul.f32 %v1213, %v1215
  %v1217 = vadd.f32 %v1213, %v1216
  %vm1218 = vweird.f32 %v1212
  %vm1219 = vweird.f32 %v1213
  %vm1220 = vmor %vm1218, %vm1219
  %v1221 = vsel %vm1220, %v1213, %v1217
  %v1222 = vand.u32 2147483647, %v1212
  %vm1223 = vcmp.eq.f32.partialorder %v1222, 8.507059e+37
  %v1224 = vand.u32 %v1212, 2147483648
  %v1225 = vor.u32 1.1754944e-38, %v1224
  %v1226 = vsel %vm1223, %v1225, %v1221
  %v1227 = vmul.f32 1.0, %v1226
  %v1228 = vtanh.pop %v1207
  %v1229 = vmul.f32 %v1227, %v1176
  %1231 = vrot.lane.b32.xlu0 %v1228, 32
  %v1232 = vpop.permute.xlu0 %1231
  %v1234 = vmul.f32 %v1227, %v1232
  %1236 = vrot.lane.b32.xlu0 %v1234, 32
  %v1237 = vpop.permute.xlu0 %1236
  %v1239 = vadd.f32 %v1229, %v1237
  %v1240 = vtanh.pop %v1239
  %1242 = vrot.lane.b32.xlu0 %v1240, 32
  %v1243 = vpop.permute.xlu0 %1242
  %v1245 = vmul.f32 %v1227, %v1243
  %v1246 = vld [vmem:[%s308] sm:$0xff]
  %1248 = vrot.lane.b32.xlu0 %v1245, 64
  %v1249 = vpop.permute.xlu0 %1248
  %v1250 = vsel %vm104, %v1249, 0
  %1252 = vmatpush.msra.mxu0 0.0
  %1253 = vmatpush.msra.mxu0 0.0
  %1254 = vmatpush.msra.mxu0 0.0
  %1255 = vmatpush.msra.mxu0 0.0
  %1256 = vmatpush.msra.mxu0 0.0
  %1257 = vmatpush.msra.mxu0 0.0
  %1258 = vmatpush.msra.mxu0 0.0
  %1259 = vmatpush.msra.mxu0 0.0
  %1260 = vmatpush.msra.mxu0 0.0
  %1261 = vmatpush.msra.mxu0 0.0
  %1262 = vmatpush.msra.mxu0 0.0
  %1263 = vmatpush.msra.mxu0 0.0
  %1264 = vmatpush.msra.mxu0 %v696
  %1265 = vmatpush.msra.mxu0 %v695
  %1266 = vmatpush.msra.mxu0 %v694
  %1267 = vmatpush.msra.mxu0 %v693
  %1268 = vmatmul.f32.gmra.mxu0 %v1250
  %v1269 = vpop.f32.mrf.mxu0
  %v1270 = vadd.f32 %v1246, %v1269
  %1271 = vdwg.mxu0
  %v1272 = vxor.u32 %v1270, 2147483648
  %v1273 = vmul.f32 %v1272, 1.442695
  %v1274 = vpow.pop %v1273
  %v1275 = vadd.f32 %v1274, 1.0
  %v1276 = vrcp.pop %v1275
  %v1277 = vmul.f32 %v1275, %v1276
  %v1278 = vsub.f32 1.0, %v1277
  %v1279 = vmul.f32 %v1276, %v1278
  %v1280 = vadd.f32 %v1276, %v1279
  %vm1281 = vweird.f32 %v1275
  %vm1282 = vweird.f32 %v1276
  %vm1283 = vmor %vm1281, %vm1282
  %v1284 = vsel %vm1283, %v1276, %v1280
  %v1285 = vand.u32 2147483647, %v1275
  %vm1286 = vcmp.eq.f32.partialorder %v1285, 8.507059e+37
  %v1287 = vand.u32 %v1275, 2147483648
  %v1288 = vor.u32 1.1754944e-38, %v1287
  %v1289 = vsel %vm1286, %v1288, %v1284
  %v1290 = vmul.f32 1.0, %v1289
  %v1291 = vtanh.pop %v1270
  %v1292 = vmul.f32 %v1290, %v1239
  %1294 = vrot.lane.b32.xlu0 %v1291, 32
  %v1295 = vpop.permute.xlu0 %1294
  %v1297 = vmul.f32 %v1290, %v1295
  %1299 = vrot.lane.b32.xlu0 %v1297, 32
  %v1300 = vpop.permute.xlu0 %1299
  %v1302 = vadd.f32 %v1292, %v1300
  %v1303 = vtanh.pop %v1302
  %1305 = vrot.lane.b32.xlu0 %v1303, 32
  %v1306 = vpop.permute.xlu0 %1305
  %v1308 = vmul.f32 %v1290, %v1306
  %v1309 = vld [vmem:[%s9] sm:$0xff]
  %v1310 = vld [vmem:[%s9 + $0x8] sm:$0xff]
  %v1311 = vld [vmem:[%s9 + $0x10] sm:$0xff]
  %v1312 = vld [vmem:[%s9 + $0x18] sm:$0xff]
  %v1313 = vld [vmem:[%s10] sm:$0x1]
  %v1315 = vperm.slane %v1313, 0
  %1318 = vrot.lane.b32.xlu0 %v1308, 64
  %v1319 = vpop.permute.xlu0 %1318
  %v1320 = vsel %vm104, %v1319, 0
  %1322 = vmatpush.msra.mxu0 0.0
  %1323 = vmatpush.msra.mxu0 0.0
  %1324 = vmatpush.msra.mxu0 0.0
  %1325 = vmatpush.msra.mxu0 0.0
  %1326 = vmatpush.msra.mxu0 0.0
  %1327 = vmatpush.msra.mxu0 0.0
  %1328 = vmatpush.msra.mxu0 0.0
  %1329 = vmatpush.msra.mxu0 0.0
  %1330 = vmatpush.msra.mxu0 0.0
  %1331 = vmatpush.msra.mxu0 0.0
  %1332 = vmatpush.msra.mxu0 0.0
  %1333 = vmatpush.msra.mxu0 0.0
  %1334 = vmatpush.msra.mxu0 %v1312
  %1335 = vmatpush.msra.mxu0 %v1311
  %1336 = vmatpush.msra.mxu0 %v1310
  %1337 = vmatpush.msra.mxu0 %v1309
  %1338 = vmatmul.f32.gmra.mxu0 %v1320
  %v1339 = vpop.f32.mrf.mxu0
  %v1340 = vadd.f32 %v1315, %v1339
  %1341 = vdwg.mxu0
  %1342 = vst.msk [vmem:[%s11] sm:$0xff] %vm53, %v1340
  // Predicated region
  $region46: #{lstm_module_forward.1} parent=0 // pred_check
    _
  $region47: #{lstm_module_forward.1} parent=0 // pred_check_branch
    %1344 = sbr.rel (0) target = $region49
  $region48: #{lstm_module_forward.1} parent=0 // pred_region
    _
  $region49: #{lstm_module_forward.1} parent=0 // pred_fallthru
    _
  // Predicated region
  $region50: #{lstm_module_forward.1} parent=0 // pred_check
    _
  $region51: #{lstm_module_forward.1} parent=0 // pred_check_branch
    %1346 = sbr.rel (0) target = $region53
  $region52: #{lstm_module_forward.1} parent=0 // pred_region
    _
  $region53: #{lstm_module_forward.1} parent=0 // pred_fallthru
    _

</llo_original>
